<compile_context>
chip_gen: v6e
topology: v6e:2x2x1
jax: 0.10.0
libtpu: 0.0.40
codegen_flags: <defaults>
</compile_context>

<pallas_src>
import math

import jax
import jax.numpy as jnp
from jax.experimental import pallas as pl
from jax.experimental.pallas import tpu as pltpu


def _geometry(H, W):
    """Lane geometry of the zero-haloed, row-flattened staging buffers."""
    HW = H * W
    xpad = -(-(W + 1) // 128) * 128        # 128-aligned left halo (3x3 buffer)
    apad = -(-(3 * W + 3) // 128) * 128    # 128-aligned left halo (7x7 buffer)
    xlen = xpad + HW + (W + 1)
    alen = apad + HW + (3 * W + 3)
    return HW, xpad, xlen, apad, alen


def _pick_batch_block(N, max_b=8):
    """Largest divisor of N <= max_b, preferring to keep >= 2 grid steps."""
    cands = [b for b in range(1, min(N, max_b) + 1) if N % b == 0]
    two_step = [b for b in cands if N // b >= 2]
    return max(two_step) if two_step else max(cands)


def _make_kernel(H, W, C_in, C_pad, C_out, B):
    HW, XPAD, XLEN, APAD, ALEN = _geometry(H, W)
    XOFF = XPAD - (W + 1)          # 3x3 tap slice base offset
    AOFF = APAD - (3 * W + 3)      # 7x7 tap slice base offset

    def kernel(x_ref, w1_ref, scale_ref, shift_ref, w2_ref, b2_ref,
               feat_ref, attn_ref, xbuf_ref, ambuf_ref):
        """One grid step = B batch elements.

        x_ref    : (B, C_in, HW)     VMEM  -- input images (native dtype)
        w1_ref   : (C_out, 9*C_pad)  VMEM  -- 3x3 taps, col=(dy*3+dx)*C_pad+c
        scale_ref: (C_out, 1)        VMEM  -- folded BN scale
        shift_ref: (C_out, 1)        VMEM  -- folded BN shift (incl. conv bias)
        w2_ref   : (2B, 49)          VMEM  -- rows [:B]=avg taps/C_out, [B:]=max taps
        b2_ref   : (1,)              SMEM  -- 7x7 conv bias
        feat_ref : (B, C_out, HW)    VMEM out
        attn_ref : (B, 1, HW)        VMEM out
        xbuf_ref : (B*C_pad, XLEN)   VMEM scratch -- zero-haloed flat images
        ambuf_ref: (2B, ALEN)        VMEM scratch -- stacked sum/max maps
        """
        cdt = xbuf_ref.dtype

        # ---- stage input: zero only halo lanes + pad-channel rows ----------
        # (interiors are fully overwritten every step; per-step halo zeroing is
        #  megacore-safe, unlike a pl.when(program_id == 0) one-time init)
        xbuf_ref[:, :XPAD] = jnp.zeros((B * C_pad, XPAD), cdt)
        xbuf_ref[:, XPAD + HW:] = jnp.zeros((B * C_pad, XLEN - XPAD - HW), cdt)
        for b in range(B):
            if C_pad > C_in:
                xbuf_ref[b * C_pad + C_in:(b + 1) * C_pad, XPAD:XPAD + HW] = (
                    jnp.zeros((C_pad - C_in, HW), cdt))
            xbuf_ref[b * C_pad:b * C_pad + C_in, XPAD:XPAD + HW] = (
                x_ref[b].astype(cdt))

        # ---- 3x3 conv as ONE MXU matmul over an 8-sublane-aligned im2col ----
        colB = jax.lax.broadcasted_iota(jnp.int32, (1, B * HW), 1) % W
        zero = jnp.zeros((), cdt)
        pieces = []
        for dy in range(3):
            for dx in range(3):
                s = XOFF + dy * W + dx
                if B == 1:
                    sl = xbuf_ref[:, s:s + HW]                     # (C_pad, HW)
                else:
                    sl = jnp.concatenate(
                        [xbuf_ref[b * C_pad:(b + 1) * C_pad, s:s + HW]
                         for b in range(B)], axis=1)               # (C_pad, B*HW)
                lo, hi = max(0, 1 - dx), W - max(0, dx - 1)
                if lo != 0 or hi != W:
                    sl = jnp.where((colB >= lo) & (colB < hi), sl, zero)
                pieces.append(sl)
        rhs = jnp.concatenate(pieces, axis=0)                      # (9*C_pad, B*HW)
        feat32 = jnp.dot(w1_ref[...], rhs,
                         preferred_element_type=jnp.float32)       # (C_out, B*HW)

        # ---- folded BatchNorm (+conv bias) and ReLU; lane-dense feat stores ----
        feat32 = jnp.maximum(feat32 * scale_ref[...] + shift_ref[...], 0.0)
        for b in range(B):
            feat_ref[b] = feat32[:, b * HW:(b + 1) * HW].astype(feat_ref.dtype)

        # ---- channel sum / max maps, stacked along sublanes per image -------
        # (1/C_out is folded into the avg-tap weights -> sum instead of mean)
        smap = jnp.sum(feat32, axis=0, keepdims=True)              # (1, B*HW)
        mmap = jnp.max(feat32, axis=0, keepdims=True)              # (1, B*HW)
        ambuf_ref[:, :APAD] = jnp.zeros((2 * B, APAD), jnp.float32)
        ambuf_ref[:, APAD + HW:] = jnp.zeros((2 * B, ALEN - APAD - HW),
                                             jnp.float32)
        for b in range(B):
            ambuf_ref[b:b + 1, APAD:APAD + HW] = smap[:, b * HW:(b + 1) * HW]
            ambuf_ref[B + b:B + b + 1, APAD:APAD + HW] = (
                mmap[:, b * HW:(b + 1) * HW])

        # ---- 7x7 attention conv: 49 wide VPU MACs on (2B, HW) slices --------
        col = jax.lax.broadcasted_iota(jnp.int32, (1, HW), 1) % W
        w2 = w2_ref[...]                                           # (2B, 49)
        acc = jnp.zeros((2 * B, HW), jnp.float32)
        for dx in range(7):
            lo, hi = max(0, 3 - dx), W - max(0, dx - 3)
            col_acc = jnp.zeros((2 * B, HW), jnp.float32)
            for dy in range(7):
                s = AOFF + dy * W + dx
                t = dy * 7 + dx
                col_acc = col_acc + ambuf_ref[:, s:s + HW] * w2[:, t:t + 1]
            if lo != 0 or hi != W:
                col_acc = jnp.where((col >= lo) & (col < hi), col_acc, 0.0)
            acc = acc + col_acc

        attn = jax.nn.sigmoid(acc[:B] + acc[B:] + b2_ref[0])       # (B, HW)
        for b in range(B):
            attn_ref[b] = attn[b:b + 1, :].astype(attn_ref.dtype)

    return kernel


def init_params(key, input_dim, conv_dim):
    """Deterministic init matching the PyTorch __init__ (kaiming_normal, bias=0)."""
    k1, k2 = jax.random.split(key)
    fan_in1 = input_dim * 3 * 3
    w1 = jax.random.normal(k1, (conv_dim, input_dim, 3, 3),
                           jnp.float32) * math.sqrt(2.0 / fan_in1)
    b1 = jnp.zeros((conv_dim,), jnp.float32)
    fan_in2 = 2 * 7 * 7
    w2 = jax.random.normal(k2, (1, 2, 7, 7),
                           jnp.float32) * math.sqrt(2.0 / fan_in2)
    b2 = jnp.zeros((1,), jnp.float32)
    return dict(
        w1=w1, b1=b1,
        gamma=jnp.ones((conv_dim,), jnp.float32),
        beta=jnp.zeros((conv_dim,), jnp.float32),
        rmean=jnp.zeros((conv_dim,), jnp.float32),
        rvar=jnp.ones((conv_dim,), jnp.float32),
        w2=w2, b2=b2,
    )


def spatial_attention(x_nchw, params, eps=1e-5, compute_dtype=jnp.float32,
                      batch_block=None):
    # compute_dtype=jnp.bfloat16 is recommended on v6e/v7x once C_in/C_out are
    # large enough for the 3x3 matmul to bind (accumulation stays f32 either
    # way); the f32 default keeps this small-shape test exact.
    N, C_in, H, W = x_nchw.shape
    w1 = params["w1"]                       # (C_out, C_in, 3, 3)
    C_out = w1.shape[0]
    HW, XPAD, XLEN, APAD, ALEN = _geometry(H, W)
    C_pad = -(-C_in // 8) * 8               # im2col channel groups -> 8 sublanes

    B = _pick_batch_block(N) if batch_block is None else batch_block
    assert N % B == 0, "batch_block must divide N"

    # Fold conv1 bias + inference-mode BatchNorm into per-channel scale/shift.
    inv_std = 1.0 / jnp.sqrt(params["rvar"] + eps)
    scale = (params["gamma"] * inv_std).reshape(C_out, 1).astype(jnp.float32)
    shift = (params["beta"]
             + (params["b1"] - params["rmean"]) * params["gamma"] * inv_std
             ).reshape(C_out, 1).astype(jnp.float32)

    # Metadata-only reshape of NCHW input; keep native dtype (no HBM round trip).
    x_flat = x_nchw.reshape(N, C_in, HW)

    # 3x3 weights: column = (dy*3+dx)*C_pad + c; pad channels get zero columns.
    w1_k = jnp.transpose(w1, (0, 2, 3, 1))                 # (C_out, 3, 3, C_in)
    w1_k = jnp.pad(w1_k, ((0, 0), (0, 0), (0, 0), (0, C_pad - C_in)))
    w1_k = w1_k.reshape(C_out, 9 * C_pad).astype(compute_dtype)

    # 7x7 weights: rows [:B] = avg taps (1/C_out folded -> kernel uses channel
    # sum), rows [B:] = max taps; column = dy*7 + dx.
    w_avg = (params["w2"][0, 0] / C_out).reshape(1, 49)
    w_max = params["w2"][0, 1].reshape(1, 49)
    w2_k = jnp.concatenate([jnp.tile(w_avg, (B, 1)),
                            jnp.tile(w_max, (B, 1))],
                           axis=0).astype(jnp.float32)     # (2B, 49)
    b2_k = params["b2"].reshape(1).astype(jnp.float32)

    kernel = _make_kernel(H, W, C_in, C_pad, C_out, B)

    feat_flat, attn_flat = pl.pallas_call(
        kernel,
        out_shape=(
            jax.ShapeDtypeStruct((N, C_out, HW), x_nchw.dtype),
            jax.ShapeDtypeStruct((N, 1, HW), x_nchw.dtype),
        ),
        grid=(N // B,),
        in_specs=[
            pl.BlockSpec((B, C_in, HW), lambda i: (i, 0, 0)),
            pl.BlockSpec((C_out, 9 * C_pad), lambda i: (0, 0)),
            pl.BlockSpec((C_out, 1), lambda i: (0, 0)),
            pl.BlockSpec((C_out, 1), lambda i: (0, 0)),
            pl.BlockSpec((2 * B, 49), lambda i: (0, 0)),
            pl.BlockSpec(memory_space=pltpu.MemorySpace.SMEM),
        ],
        out_specs=(
            pl.BlockSpec((B, C_out, HW), lambda i: (i, 0, 0)),
            pl.BlockSpec((B, 1, HW), lambda i: (i, 0, 0)),
        ),
        scratch_shapes=[
            pltpu.VMEM((B * C_pad, XLEN), compute_dtype),
            pltpu.VMEM((2 * B, ALEN), jnp.float32),
        ],
        compiler_params=pltpu.CompilerParams(
            dimension_semantics=("parallel",)),
    )(x_flat, w1_k, scale, shift, w2_k, b2_k)

    feat = feat_flat.reshape(N, C_out, H, W)   # metadata-only
    attn = attn_flat.reshape(N, 1, H, W)       # metadata-only
    return feat, attn


def _reference(x, p, eps=1e-5):
    """Pure-JAX NCHW reference (lax.conv) for validation."""
    y = jax.lax.conv_general_dilated(
        x, p["w1"], (1, 1), ((1, 1), (1, 1)),
        dimension_numbers=("NCHW", "OIHW", "NCHW"))
    y = y + p["b1"][None, :, None, None]
    y = (y - p["rmean"][None, :, None, None]) / jnp.sqrt(
        p["rvar"] + eps)[None, :, None, None]
    y = y * p["gamma"][None, :, None, None] + p["beta"][None, :, None, None]
    y = jnp.maximum(y, 0.0)
    avg = jnp.mean(y, axis=1, keepdims=True)
    mx = jnp.max(y, axis=1, keepdims=True)
    a = jnp.concatenate([avg, mx], axis=1)
    a = jax.lax.conv_general_dilated(
        a, p["w2"], (1, 1), ((3, 3), (3, 3)),
        dimension_numbers=("NCHW", "OIHW", "NCHW"))
    a = a + p["b2"][None, :, None, None]
    return y, jax.nn.sigmoid(a)


if __name__ == "__main__":
    N, C_IN, H, W = 2, 4, 16, 16
    CONV_DIM = 8

    key = jax.random.PRNGKey(0)
    kx, kp = jax.random.split(key)
    x = jax.random.normal(kx, (N, C_IN, H, W), jnp.float32)
    params = init_params(kp, C_IN, CONV_DIM)

    feat, attn = jax.jit(spatial_attention)(x, params)
    jax.block_until_ready((feat, attn))

    feat_ref, attn_ref = _reference(x, params)
    assert feat.shape == (N, CONV_DIM, H, W) and attn.shape == (N, 1, H, W)
    assert jnp.allclose(feat, feat_ref, atol=2e-3, rtol=2e-3)
    assert jnp.allclose(attn, attn_ref, atol=2e-3, rtol=2e-3)

    print("KERNEL_OK")
</pallas_src>

<mosaic_0001>
module attributes {stable_mosaic.version = 11 : i64} {
  func.func @kernel(%arg0: i32, %arg1: memref<1x4x256xf32, #tpu.memory_space<vmem>>, %arg2: memref<8x72xf32, #tpu.memory_space<vmem>>, %arg3: memref<8x1xf32, #tpu.memory_space<vmem>>, %arg4: memref<8x1xf32, #tpu.memory_space<vmem>>, %arg5: memref<2x49xf32, #tpu.memory_space<vmem>>, %arg6: memref<1xf32, #tpu.memory_space<smem>>, %arg7: memref<1x8x256xf32, #tpu.memory_space<vmem>>, %arg8: memref<1x1x256xf32, #tpu.memory_space<vmem>>, %arg9: memref<8x401xf32, #tpu.memory_space<vmem>>, %arg10: memref<2x435xf32, #tpu.memory_space<vmem>>) attributes {dimension_semantics = [#tpu.dimension_semantics<parallel>], iteration_bounds = array<i64: 2>, scalar_prefetch = 0 : i64, scratch_operands = 2 : i64, tpu.core_type = #tpu.core_type<tc>, window_params = [{transform_indices = @transform_0, window_bounds = array<i64: 1, 4, 256>}, {pipeline_mode = #tpu.pipeline_mode<synchronous>, transform_indices = @transform_1, window_bounds = array<i64: 8, 72>}, {pipeline_mode = #tpu.pipeline_mode<synchronous>, transform_indices = @transform_2, window_bounds = array<i64: 8, 1>}, {pipeline_mode = #tpu.pipeline_mode<synchronous>, transform_indices = @transform_3, window_bounds = array<i64: 8, 1>}, {pipeline_mode = #tpu.pipeline_mode<synchronous>, transform_indices = @transform_4, window_bounds = array<i64: 2, 49>}, {transform_indices = @transform_5, window_bounds = array<i64: 1>}, {transform_indices = @transform_6, window_bounds = array<i64: 1, 8, 256>}, {transform_indices = @transform_7, window_bounds = array<i64: 1, 1, 256>}]} {
    %cst = arith.constant 0.000000e+00 : f32
    %0 = vector.broadcast %cst : f32 to vector<8x128xf32>
    %c0 = arith.constant 0 : index
    %c0_0 = arith.constant 0 : index
    %1 = vector.load %arg9[%c0, %c0_0] : memref<8x401xf32, #tpu.memory_space<vmem>>, vector<8x128xf32>
    tpu.vector_store %arg9[%c0, %c0_0], %0 {strides = array<i32>} : memref<8x401xf32, #tpu.memory_space<vmem>>, vector<8x128xf32>,
    %cst_1 = arith.constant 0.000000e+00 : f32
    %2 = vector.broadcast %cst_1 : f32 to vector<8x17xf32>
    %c0_2 = arith.constant 0 : index
    %c384 = arith.constant 384 : index
    %3 = vector.load %arg9[%c0_2, %c384] : memref<8x401xf32, #tpu.memory_space<vmem>>, vector<8x17xf32>
    tpu.vector_store %arg9[%c0_2, %c384], %2 {strides = array<i32>} : memref<8x401xf32, #tpu.memory_space<vmem>>, vector<8x17xf32>,
    %cst_3 = arith.constant 0.000000e+00 : f32
    %4 = vector.broadcast %cst_3 : f32 to vector<4x256xf32>
    %c4 = arith.constant 4 : index
    %c128 = arith.constant 128 : index
    %5 = vector.load %arg9[%c4, %c128] : memref<8x401xf32, #tpu.memory_space<vmem>>, vector<4x256xf32>
    tpu.vector_store %arg9[%c4, %c128], %4 {strides = array<i32>} : memref<8x401xf32, #tpu.memory_space<vmem>>, vector<4x256xf32>,
    %c0_4 = arith.constant 0 : index
    %c0_5 = arith.constant 0 : index
    %c0_6 = arith.constant 0 : index
    %6 = vector.load %arg1[%c0_4, %c0_5, %c0_6] : memref<1x4x256xf32, #tpu.memory_space<vmem>>, vector<1x4x256xf32>
    %7 = vector.shape_cast %6 : vector<1x4x256xf32> to vector<4x256xf32>
    %c0_7 = arith.constant 0 : index
    %c128_8 = arith.constant 128 : index
    %8 = vector.load %arg9[%c0_7, %c128_8] : memref<8x401xf32, #tpu.memory_space<vmem>>, vector<4x256xf32>
    tpu.vector_store %arg9[%c0_7, %c128_8], %7 {strides = array<i32>} : memref<8x401xf32, #tpu.memory_space<vmem>>, vector<4x256xf32>,
    %9 = tpu.iota {dimensions = array<i32: 1>} : vector<1x256xi32>
    %c16_i32 = arith.constant 16 : i32
    %c0_i32 = arith.constant 0 : i32
    %10 = arith.cmpi eq, %c16_i32, %c0_i32 : i32
    %c1_i32 = arith.constant 1 : i32
    %11 = arith.select %10, %c1_i32, %c16_i32 : i32
    %12 = vector.broadcast %11 : i32 to vector<1x256xi32>
    %13 = arith.remsi %9, %12 : vector<1x256xi32>
    %c0_i32_9 = arith.constant 0 : i32
    %14 = vector.broadcast %c0_i32_9 : i32 to vector<1x256xi32>
    %15 = arith.cmpi ne, %13, %14 : vector<1x256xi32>
    %c0_i32_10 = arith.constant 0 : i32
    %16 = vector.broadcast %c0_i32_10 : i32 to vector<1x256xi32>
    %17 = arith.cmpi slt, %13, %16 : vector<1x256xi32>
    %c0_i32_11 = arith.constant 0 : i32
    %18 = arith.cmpi slt, %11, %c0_i32_11 : i32
    %19 = vector.broadcast %18 : i1 to vector<1x256xi1>
    %20 = vector.broadcast %19 : vector<1x256xi1> to vector<1x256xi1>
    %21 = arith.xori %17, %20 : vector<1x256xi1>
    %22 = arith.andi %21, %15 : vector<1x256xi1>
    %23 = vector.broadcast %11 : i32 to vector<1x256xi32>
    %24 = arith.addi %13, %23 : vector<1x256xi32>
    %25 = arith.select %22, %24, %13 : vector<1x256xi1>, vector<1x256xi32>
    %c0_12 = arith.constant 0 : index
    %c111 = arith.constant 111 : index
    %26 = vector.load %arg9[%c0_12, %c111] : memref<8x401xf32, #tpu.memory_space<vmem>>, vector<8x256xf32>
    %c1_i32_13 = arith.constant 1 : i32
    %27 = vector.broadcast %c1_i32_13 : i32 to vector<1x256xi32>
    %28 = arith.cmpi sge, %25, %27 : vector<1x256xi32>
    %c16_i32_14 = arith.constant 16 : i32
    %29 = vector.broadcast %c16_i32_14 : i32 to vector<1x256xi32>
    %30 = arith.cmpi slt, %25, %29 : vector<1x256xi32>
    %31 = arith.andi %28, %30 : vector<1x256xi1>
    %cst_15 = arith.constant 0.000000e+00 : f32
    %32 = vector.shape_cast %31 : vector<1x256xi1> to vector<1x256xi1>
    %33 = vector.broadcast %32 : vector<1x256xi1> to vector<8x256xi1>
    %34 = vector.broadcast %cst_15 : f32 to vector<8x256xf32>
    %35 = arith.select %33, %26, %34 : vector<8x256xi1>, vector<8x256xf32>
    %c0_16 = arith.constant 0 : index
    %c112 = arith.constant 112 : index
    %36 = vector.load %arg9[%c0_16, %c112] : memref<8x401xf32, #tpu.memory_space<vmem>>, vector<8x256xf32>
    %c0_17 = arith.constant 0 : index
    %c113 = arith.constant 113 : index
    %37 = vector.load %arg9[%c0_17, %c113] : memref<8x401xf32, #tpu.memory_space<vmem>>, vector<8x256xf32>
    %c0_i32_18 = arith.constant 0 : i32
    %38 = vector.broadcast %c0_i32_18 : i32 to vector<1x256xi32>
    %39 = arith.cmpi sge, %25, %38 : vector<1x256xi32>
    %c15_i32 = arith.constant 15 : i32
    %40 = vector.broadcast %c15_i32 : i32 to vector<1x256xi32>
    %41 = arith.cmpi slt, %25, %40 : vector<1x256xi32>
    %42 = arith.andi %39, %41 : vector<1x256xi1>
    %cst_19 = arith.constant 0.000000e+00 : f32
    %43 = vector.shape_cast %42 : vector<1x256xi1> to vector<1x256xi1>
    %44 = vector.broadcast %43 : vector<1x256xi1> to vector<8x256xi1>
    %45 = vector.broadcast %cst_19 : f32 to vector<8x256xf32>
    %46 = arith.select %44, %37, %45 : vector<8x256xi1>, vector<8x256xf32>
    %c0_20 = arith.constant 0 : index
    %c127 = arith.constant 127 : index
    %47 = vector.load %arg9[%c0_20, %c127] : memref<8x401xf32, #tpu.memory_space<vmem>>, vector<8x256xf32>
    %c1_i32_21 = arith.constant 1 : i32
    %48 = vector.broadcast %c1_i32_21 : i32 to vector<1x256xi32>
    %49 = arith.cmpi sge, %25, %48 : vector<1x256xi32>
    %c16_i32_22 = arith.constant 16 : i32
    %50 = vector.broadcast %c16_i32_22 : i32 to vector<1x256xi32>
    %51 = arith.cmpi slt, %25, %50 : vector<1x256xi32>
    %52 = arith.andi %49, %51 : vector<1x256xi1>
    %cst_23 = arith.constant 0.000000e+00 : f32
    %53 = vector.shape_cast %52 : vector<1x256xi1> to vector<1x256xi1>
    %54 = vector.broadcast %53 : vector<1x256xi1> to vector<8x256xi1>
    %55 = vector.broadcast %cst_23 : f32 to vector<8x256xf32>
    %56 = arith.select %54, %47, %55 : vector<8x256xi1>, vector<8x256xf32>
    %c0_24 = arith.constant 0 : index
    %c128_25 = arith.constant 128 : index
    %57 = vector.load %arg9[%c0_24, %c128_25] : memref<8x401xf32, #tpu.memory_space<vmem>>, vector<8x256xf32>
    %c0_26 = arith.constant 0 : index
    %c129 = arith.constant 129 : index
    %58 = vector.load %arg9[%c0_26, %c129] : memref<8x401xf32, #tpu.memory_space<vmem>>, vector<8x256xf32>
    %c0_i32_27 = arith.constant 0 : i32
    %59 = vector.broadcast %c0_i32_27 : i32 to vector<1x256xi32>
    %60 = arith.cmpi sge, %25, %59 : vector<1x256xi32>
    %c15_i32_28 = arith.constant 15 : i32
    %61 = vector.broadcast %c15_i32_28 : i32 to vector<1x256xi32>
    %62 = arith.cmpi slt, %25, %61 : vector<1x256xi32>
    %63 = arith.andi %60, %62 : vector<1x256xi1>
    %cst_29 = arith.constant 0.000000e+00 : f32
    %64 = vector.shape_cast %63 : vector<1x256xi1> to vector<1x256xi1>
    %65 = vector.broadcast %64 : vector<1x256xi1> to vector<8x256xi1>
    %66 = vector.broadcast %cst_29 : f32 to vector<8x256xf32>
    %67 = arith.select %65, %58, %66 : vector<8x256xi1>, vector<8x256xf32>
    %c0_30 = arith.constant 0 : index
    %c143 = arith.constant 143 : index
    %68 = vector.load %arg9[%c0_30, %c143] : memref<8x401xf32, #tpu.memory_space<vmem>>, vector<8x256xf32>
    %c1_i32_31 = arith.constant 1 : i32
    %69 = vector.broadcast %c1_i32_31 : i32 to vector<1x256xi32>
    %70 = arith.cmpi sge, %25, %69 : vector<1x256xi32>
    %c16_i32_32 = arith.constant 16 : i32
    %71 = vector.broadcast %c16_i32_32 : i32 to vector<1x256xi32>
    %72 = arith.cmpi slt, %25, %71 : vector<1x256xi32>
    %73 = arith.andi %70, %72 : vector<1x256xi1>
    %cst_33 = arith.constant 0.000000e+00 : f32
    %74 = vector.shape_cast %73 : vector<1x256xi1> to vector<1x256xi1>
    %75 = vector.broadcast %74 : vector<1x256xi1> to vector<8x256xi1>
    %76 = vector.broadcast %cst_33 : f32 to vector<8x256xf32>
    %77 = arith.select %75, %68, %76 : vector<8x256xi1>, vector<8x256xf32>
    %c0_34 = arith.constant 0 : index
    %c144 = arith.constant 144 : index
    %78 = vector.load %arg9[%c0_34, %c144] : memref<8x401xf32, #tpu.memory_space<vmem>>, vector<8x256xf32>
    %c0_35 = arith.constant 0 : index
    %c145 = arith.constant 145 : index
    %79 = vector.load %arg9[%c0_35, %c145] : memref<8x401xf32, #tpu.memory_space<vmem>>, vector<8x256xf32>
    %c0_i32_36 = arith.constant 0 : i32
    %80 = vector.broadcast %c0_i32_36 : i32 to vector<1x256xi32>
    %81 = arith.cmpi sge, %25, %80 : vector<1x256xi32>
    %c15_i32_37 = arith.constant 15 : i32
    %82 = vector.broadcast %c15_i32_37 : i32 to vector<1x256xi32>
    %83 = arith.cmpi slt, %25, %82 : vector<1x256xi32>
    %84 = arith.andi %81, %83 : vector<1x256xi1>
    %cst_38 = arith.constant 0.000000e+00 : f32
    %85 = vector.shape_cast %84 : vector<1x256xi1> to vector<1x256xi1>
    %86 = vector.broadcast %85 : vector<1x256xi1> to vector<8x256xi1>
    %87 = vector.broadcast %cst_38 : f32 to vector<8x256xf32>
    %88 = arith.select %86, %79, %87 : vector<8x256xi1>, vector<8x256xf32>
    %89 = tpu.concatenate %35, %36, %46, %56, %57, %67, %77, %78, %88 in 0 : vector<8x256xf32>, vector<8x256xf32>, vector<8x256xf32>, vector<8x256xf32>, vector<8x256xf32>, vector<8x256xf32>, vector<8x256xf32>, vector<8x256xf32>, vector<8x256xf32> -> vector<72x256xf32>
    %c0_39 = arith.constant 0 : index
    %c0_40 = arith.constant 0 : index
    %90 = vector.load %arg2[%c0_39, %c0_40] : memref<8x72xf32, #tpu.memory_space<vmem>>, vector<8x72xf32>
    %cst_41 = arith.constant dense<0.000000e+00> : vector<8x256xf32>
    %91 = tpu.matmul %90, %89, %cst_41 {dimension_numbers = #tpu.dot_dimension_numbers<[1], [0], [0], [1], [0, 0, 1, 1], [], []>} : vector<8x72xf32>, vector<72x256xf32>, vector<8x256xf32> -> vector<8x256xf32>
    %c0_42 = arith.constant 0 : index
    %c0_43 = arith.constant 0 : index
    %92 = vector.load %arg3[%c0_42, %c0_43] : memref<8x1xf32, #tpu.memory_space<vmem>>, vector<8x1xf32>
    %93 = vector.broadcast %92 : vector<8x1xf32> to vector<8x256xf32>
    %94 = arith.mulf %91, %93 : vector<8x256xf32>
    %c0_44 = arith.constant 0 : index
    %c0_45 = arith.constant 0 : index
    %95 = vector.load %arg4[%c0_44, %c0_45] : memref<8x1xf32, #tpu.memory_space<vmem>>, vector<8x1xf32>
    %96 = vector.broadcast %95 : vector<8x1xf32> to vector<8x256xf32>
    %97 = arith.addf %94, %96 : vector<8x256xf32>
    %cst_46 = arith.constant 0.000000e+00 : f32
    %98 = vector.broadcast %cst_46 : f32 to vector<8x256xf32>
    %99 = arith.maximumf %97, %98 : vector<8x256xf32>
    %c0_47 = arith.constant 0 : index
    %c0_48 = arith.constant 0 : index
    %c0_49 = arith.constant 0 : index
    %100 = vector.load %arg7[%c0_47, %c0_48, %c0_49] : memref<1x8x256xf32, #tpu.memory_space<vmem>>, vector<1x8x256xf32>
    %101 = vector.shape_cast %100 : vector<1x8x256xf32> to vector<8x256xf32>
    %102 = vector.shape_cast %99 : vector<8x256xf32> to vector<1x8x256xf32>
    tpu.vector_store %arg7[%c0_47, %c0_48, %c0_49], %102 {strides = array<i32>} : memref<1x8x256xf32, #tpu.memory_space<vmem>>, vector<1x8x256xf32>,
    %cst_50 = arith.constant dense<0.000000e+00> : vector<256xf32>
    %103 = vector.multi_reduction <add>, %99, %cst_50 [0] : vector<8x256xf32> to vector<256xf32>
    %104 = vector.shape_cast %103 : vector<256xf32> to vector<1x256xf32>
    %cst_51 = arith.constant dense<0xFF800000> : vector<256xf32>
    %105 = vector.multi_reduction <maximumf>, %99, %cst_51 [0] : vector<8x256xf32> to vector<256xf32>
    %106 = vector.shape_cast %105 : vector<256xf32> to vector<1x256xf32>
    %cst_52 = arith.constant 0.000000e+00 : f32
    %107 = vector.broadcast %cst_52 : f32 to vector<2x128xf32>
    %c0_53 = arith.constant 0 : index
    %c0_54 = arith.constant 0 : index
    %108 = vector.load %arg10[%c0_53, %c0_54] : memref<2x435xf32, #tpu.memory_space<vmem>>, vector<2x128xf32>
    tpu.vector_store %arg10[%c0_53, %c0_54], %107 {strides = array<i32>} : memref<2x435xf32, #tpu.memory_space<vmem>>, vector<2x128xf32>,
    %cst_55 = arith.constant 0.000000e+00 : f32
    %109 = vector.broadcast %cst_55 : f32 to vector<2x51xf32>
    %c0_56 = arith.constant 0 : index
    %c384_57 = arith.constant 384 : index
    %110 = vector.load %arg10[%c0_56, %c384_57] : memref<2x435xf32, #tpu.memory_space<vmem>>, vector<2x51xf32>
    tpu.vector_store %arg10[%c0_56, %c384_57], %109 {strides = array<i32>} : memref<2x435xf32, #tpu.memory_space<vmem>>, vector<2x51xf32>,
    %c0_58 = arith.constant 0 : index
    %c128_59 = arith.constant 128 : index
    %111 = vector.load %arg10[%c0_58, %c128_59] : memref<2x435xf32, #tpu.memory_space<vmem>>, vector<1x256xf32>
    tpu.vector_store %arg10[%c0_58, %c128_59], %104 {strides = array<i32>} : memref<2x435xf32, #tpu.memory_space<vmem>>, vector<1x256xf32>,
    %c1 = arith.constant 1 : index
    %c128_60 = arith.constant 128 : index
    %112 = vector.load %arg10[%c1, %c128_60] : memref<2x435xf32, #tpu.memory_space<vmem>>, vector<1x256xf32>
    tpu.vector_store %arg10[%c1, %c128_60], %106 {strides = array<i32>} : memref<2x435xf32, #tpu.memory_space<vmem>>, vector<1x256xf32>,
    %113 = tpu.iota {dimensions = array<i32: 1>} : vector<1x256xi32>
    %c16_i32_61 = arith.constant 16 : i32
    %c0_i32_62 = arith.constant 0 : i32
    %114 = arith.cmpi eq, %c16_i32_61, %c0_i32_62 : i32
    %c1_i32_63 = arith.constant 1 : i32
    %115 = arith.select %114, %c1_i32_63, %c16_i32_61 : i32
    %116 = vector.broadcast %115 : i32 to vector<1x256xi32>
    %117 = arith.remsi %113, %116 : vector<1x256xi32>
    %c0_i32_64 = arith.constant 0 : i32
    %118 = vector.broadcast %c0_i32_64 : i32 to vector<1x256xi32>
    %119 = arith.cmpi ne, %117, %118 : vector<1x256xi32>
    %c0_i32_65 = arith.constant 0 : i32
    %120 = vector.broadcast %c0_i32_65 : i32 to vector<1x256xi32>
    %121 = arith.cmpi slt, %117, %120 : vector<1x256xi32>
    %c0_i32_66 = arith.constant 0 : i32
    %122 = arith.cmpi slt, %115, %c0_i32_66 : i32
    %123 = vector.broadcast %122 : i1 to vector<1x256xi1>
    %124 = vector.broadcast %123 : vector<1x256xi1> to vector<1x256xi1>
    %125 = arith.xori %121, %124 : vector<1x256xi1>
    %126 = arith.andi %125, %119 : vector<1x256xi1>
    %127 = vector.broadcast %115 : i32 to vector<1x256xi32>
    %128 = arith.addi %117, %127 : vector<1x256xi32>
    %129 = arith.select %126, %128, %117 : vector<1x256xi1>, vector<1x256xi32>
    %c0_67 = arith.constant 0 : index
    %c0_68 = arith.constant 0 : index
    %130 = vector.load %arg5[%c0_67, %c0_68] : memref<2x49xf32, #tpu.memory_space<vmem>>, vector<2x49xf32>
    %cst_69 = arith.constant 0.000000e+00 : f32
    %131 = vector.broadcast %cst_69 : f32 to vector<2x256xf32>
    %cst_70 = arith.constant 0.000000e+00 : f32
    %132 = vector.broadcast %cst_70 : f32 to vector<2x256xf32>
    %c0_71 = arith.constant 0 : index
    %c77 = arith.constant 77 : index
    %133 = vector.load %arg10[%c0_71, %c77] : memref<2x435xf32, #tpu.memory_space<vmem>>, vector<2x256xf32>
    %134 = vector.extract_strided_slice %130 {offsets = [0, 0], sizes = [2, 1], strides = [1, 1]} : vector<2x49xf32> to vector<2x1xf32>
    %135 = vector.broadcast %134 : vector<2x1xf32> to vector<2x256xf32>
    %136 = arith.mulf %133, %135 : vector<2x256xf32>
    %137 = arith.addf %132, %136 : vector<2x256xf32>
    %c0_72 = arith.constant 0 : index
    %c93 = arith.constant 93 : index
    %138 = vector.load %arg10[%c0_72, %c93] : memref<2x435xf32, #tpu.memory_space<vmem>>, vector<2x256xf32>
    %139 = vector.extract_strided_slice %130 {offsets = [0, 7], sizes = [2, 1], strides = [1, 1]} : vector<2x49xf32> to vector<2x1xf32>
    %140 = vector.broadcast %139 : vector<2x1xf32> to vector<2x256xf32>
    %141 = arith.mulf %138, %140 : vector<2x256xf32>
    %142 = arith.addf %137, %141 : vector<2x256xf32>
    %c0_73 = arith.constant 0 : index
    %c109 = arith.constant 109 : index
    %143 = vector.load %arg10[%c0_73, %c109] : memref<2x435xf32, #tpu.memory_space<vmem>>, vector<2x256xf32>
    %144 = vector.extract_strided_slice %130 {offsets = [0, 14], sizes = [2, 1], strides = [1, 1]} : vector<2x49xf32> to vector<2x1xf32>
    %145 = vector.broadcast %144 : vector<2x1xf32> to vector<2x256xf32>
    %146 = arith.mulf %143, %145 : vector<2x256xf32>
    %147 = arith.addf %142, %146 : vector<2x256xf32>
    %c0_74 = arith.constant 0 : index
    %c125 = arith.constant 125 : index
    %148 = vector.load %arg10[%c0_74, %c125] : memref<2x435xf32, #tpu.memory_space<vmem>>, vector<2x256xf32>
    %149 = vector.extract_strided_slice %130 {offsets = [0, 21], sizes = [2, 1], strides = [1, 1]} : vector<2x49xf32> to vector<2x1xf32>
    %150 = vector.broadcast %149 : vector<2x1xf32> to vector<2x256xf32>
    %151 = arith.mulf %148, %150 : vector<2x256xf32>
    %152 = arith.addf %147, %151 : vector<2x256xf32>
    %c0_75 = arith.constant 0 : index
    %c141 = arith.constant 141 : index
    %153 = vector.load %arg10[%c0_75, %c141] : memref<2x435xf32, #tpu.memory_space<vmem>>, vector<2x256xf32>
    %154 = vector.extract_strided_slice %130 {offsets = [0, 28], sizes = [2, 1], strides = [1, 1]} : vector<2x49xf32> to vector<2x1xf32>
    %155 = vector.broadcast %154 : vector<2x1xf32> to vector<2x256xf32>
    %156 = arith.mulf %153, %155 : vector<2x256xf32>
    %157 = arith.addf %152, %156 : vector<2x256xf32>
    %c0_76 = arith.constant 0 : index
    %c157 = arith.constant 157 : index
    %158 = vector.load %arg10[%c0_76, %c157] : memref<2x435xf32, #tpu.memory_space<vmem>>, vector<2x256xf32>
    %159 = vector.extract_strided_slice %130 {offsets = [0, 35], sizes = [2, 1], strides = [1, 1]} : vector<2x49xf32> to vector<2x1xf32>
    %160 = vector.broadcast %159 : vector<2x1xf32> to vector<2x256xf32>
    %161 = arith.mulf %158, %160 : vector<2x256xf32>
    %162 = arith.addf %157, %161 : vector<2x256xf32>
    %c0_77 = arith.constant 0 : index
    %c173 = arith.constant 173 : index
    %163 = vector.load %arg10[%c0_77, %c173] : memref<2x435xf32, #tpu.memory_space<vmem>>, vector<2x256xf32>
    %164 = vector.extract_strided_slice %130 {offsets = [0, 42], sizes = [2, 1], strides = [1, 1]} : vector<2x49xf32> to vector<2x1xf32>
    %165 = vector.broadcast %164 : vector<2x1xf32> to vector<2x256xf32>
    %166 = arith.mulf %163, %165 : vector<2x256xf32>
    %167 = arith.addf %162, %166 : vector<2x256xf32>
    %c3_i32 = arith.constant 3 : i32
    %168 = vector.broadcast %c3_i32 : i32 to vector<1x256xi32>
    %169 = arith.cmpi sge, %129, %168 : vector<1x256xi32>
    %c16_i32_78 = arith.constant 16 : i32
    %170 = vector.broadcast %c16_i32_78 : i32 to vector<1x256xi32>
    %171 = arith.cmpi slt, %129, %170 : vector<1x256xi32>
    %172 = arith.andi %169, %171 : vector<1x256xi1>
    %cst_79 = arith.constant 0.000000e+00 : f32
    %173 = vector.shape_cast %172 : vector<1x256xi1> to vector<1x256xi1>
    %174 = vector.broadcast %173 : vector<1x256xi1> to vector<2x256xi1>
    %175 = vector.broadcast %cst_79 : f32 to vector<2x256xf32>
    %176 = arith.select %174, %167, %175 : vector<2x256xi1>, vector<2x256xf32>
    %177 = arith.addf %131, %176 : vector<2x256xf32>
    %cst_80 = arith.constant 0.000000e+00 : f32
    %178 = vector.broadcast %cst_80 : f32 to vector<2x256xf32>
    %c0_81 = arith.constant 0 : index
    %c78 = arith.constant 78 : index
    %179 = vector.load %arg10[%c0_81, %c78] : memref<2x435xf32, #tpu.memory_space<vmem>>, vector<2x256xf32>
    %180 = vector.extract_strided_slice %130 {offsets = [0, 1], sizes = [2, 1], strides = [1, 1]} : vector<2x49xf32> to vector<2x1xf32>
    %181 = vector.broadcast %180 : vector<2x1xf32> to vector<2x256xf32>
    %182 = arith.mulf %179, %181 : vector<2x256xf32>
    %183 = arith.addf %178, %182 : vector<2x256xf32>
    %c0_82 = arith.constant 0 : index
    %c94 = arith.constant 94 : index
    %184 = vector.load %arg10[%c0_82, %c94] : memref<2x435xf32, #tpu.memory_space<vmem>>, vector<2x256xf32>
    %185 = vector.extract_strided_slice %130 {offsets = [0, 8], sizes = [2, 1], strides = [1, 1]} : vector<2x49xf32> to vector<2x1xf32>
    %186 = vector.broadcast %185 : vector<2x1xf32> to vector<2x256xf32>
    %187 = arith.mulf %184, %186 : vector<2x256xf32>
    %188 = arith.addf %183, %187 : vector<2x256xf32>
    %c0_83 = arith.constant 0 : index
    %c110 = arith.constant 110 : index
    %189 = vector.load %arg10[%c0_83, %c110] : memref<2x435xf32, #tpu.memory_space<vmem>>, vector<2x256xf32>
    %190 = vector.extract_strided_slice %130 {offsets = [0, 15], sizes = [2, 1], strides = [1, 1]} : vector<2x49xf32> to vector<2x1xf32>
    %191 = vector.broadcast %190 : vector<2x1xf32> to vector<2x256xf32>
    %192 = arith.mulf %189, %191 : vector<2x256xf32>
    %193 = arith.addf %188, %192 : vector<2x256xf32>
    %c0_84 = arith.constant 0 : index
    %c126 = arith.constant 126 : index
    %194 = vector.load %arg10[%c0_84, %c126] : memref<2x435xf32, #tpu.memory_space<vmem>>, vector<2x256xf32>
    %195 = vector.extract_strided_slice %130 {offsets = [0, 22], sizes = [2, 1], strides = [1, 1]} : vector<2x49xf32> to vector<2x1xf32>
    %196 = vector.broadcast %195 : vector<2x1xf32> to vector<2x256xf32>
    %197 = arith.mulf %194, %196 : vector<2x256xf32>
    %198 = arith.addf %193, %197 : vector<2x256xf32>
    %c0_85 = arith.constant 0 : index
    %c142 = arith.constant 142 : index
    %199 = vector.load %arg10[%c0_85, %c142] : memref<2x435xf32, #tpu.memory_space<vmem>>, vector<2x256xf32>
    %200 = vector.extract_strided_slice %130 {offsets = [0, 29], sizes = [2, 1], strides = [1, 1]} : vector<2x49xf32> to vector<2x1xf32>
    %201 = vector.broadcast %200 : vector<2x1xf32> to vector<2x256xf32>
    %202 = arith.mulf %199, %201 : vector<2x256xf32>
    %203 = arith.addf %198, %202 : vector<2x256xf32>
    %c0_86 = arith.constant 0 : index
    %c158 = arith.constant 158 : index
    %204 = vector.load %arg10[%c0_86, %c158] : memref<2x435xf32, #tpu.memory_space<vmem>>, vector<2x256xf32>
    %205 = vector.extract_strided_slice %130 {offsets = [0, 36], sizes = [2, 1], strides = [1, 1]} : vector<2x49xf32> to vector<2x1xf32>
    %206 = vector.broadcast %205 : vector<2x1xf32> to vector<2x256xf32>
    %207 = arith.mulf %204, %206 : vector<2x256xf32>
    %208 = arith.addf %203, %207 : vector<2x256xf32>
    %c0_87 = arith.constant 0 : index
    %c174 = arith.constant 174 : index
    %209 = vector.load %arg10[%c0_87, %c174] : memref<2x435xf32, #tpu.memory_space<vmem>>, vector<2x256xf32>
    %210 = vector.extract_strided_slice %130 {offsets = [0, 43], sizes = [2, 1], strides = [1, 1]} : vector<2x49xf32> to vector<2x1xf32>
    %211 = vector.broadcast %210 : vector<2x1xf32> to vector<2x256xf32>
    %212 = arith.mulf %209, %211 : vector<2x256xf32>
    %213 = arith.addf %208, %212 : vector<2x256xf32>
    %c2_i32 = arith.constant 2 : i32
    %214 = vector.broadcast %c2_i32 : i32 to vector<1x256xi32>
    %215 = arith.cmpi sge, %129, %214 : vector<1x256xi32>
    %c16_i32_88 = arith.constant 16 : i32
    %216 = vector.broadcast %c16_i32_88 : i32 to vector<1x256xi32>
    %217 = arith.cmpi slt, %129, %216 : vector<1x256xi32>
    %218 = arith.andi %215, %217 : vector<1x256xi1>
    %cst_89 = arith.constant 0.000000e+00 : f32
    %219 = vector.shape_cast %218 : vector<1x256xi1> to vector<1x256xi1>
    %220 = vector.broadcast %219 : vector<1x256xi1> to vector<2x256xi1>
    %221 = vector.broadcast %cst_89 : f32 to vector<2x256xf32>
    %222 = arith.select %220, %213, %221 : vector<2x256xi1>, vector<2x256xf32>
    %223 = arith.addf %177, %222 : vector<2x256xf32>
    %cst_90 = arith.constant 0.000000e+00 : f32
    %224 = vector.broadcast %cst_90 : f32 to vector<2x256xf32>
    %c0_91 = arith.constant 0 : index
    %c79 = arith.constant 79 : index
    %225 = vector.load %arg10[%c0_91, %c79] : memref<2x435xf32, #tpu.memory_space<vmem>>, vector<2x256xf32>
    %226 = vector.extract_strided_slice %130 {offsets = [0, 2], sizes = [2, 1], strides = [1, 1]} : vector<2x49xf32> to vector<2x1xf32>
    %227 = vector.broadcast %226 : vector<2x1xf32> to vector<2x256xf32>
    %228 = arith.mulf %225, %227 : vector<2x256xf32>
    %229 = arith.addf %224, %228 : vector<2x256xf32>
    %c0_92 = arith.constant 0 : index
    %c95 = arith.constant 95 : index
    %230 = vector.load %arg10[%c0_92, %c95] : memref<2x435xf32, #tpu.memory_space<vmem>>, vector<2x256xf32>
    %231 = vector.extract_strided_slice %130 {offsets = [0, 9], sizes = [2, 1], strides = [1, 1]} : vector<2x49xf32> to vector<2x1xf32>
    %232 = vector.broadcast %231 : vector<2x1xf32> to vector<2x256xf32>
    %233 = arith.mulf %230, %232 : vector<2x256xf32>
    %234 = arith.addf %229, %233 : vector<2x256xf32>
    %c0_93 = arith.constant 0 : index
    %c111_94 = arith.constant 111 : index
    %235 = vector.load %arg10[%c0_93, %c111_94] : memref<2x435xf32, #tpu.memory_space<vmem>>, vector<2x256xf32>
    %236 = vector.extract_strided_slice %130 {offsets = [0, 16], sizes = [2, 1], strides = [1, 1]} : vector<2x49xf32> to vector<2x1xf32>
    %237 = vector.broadcast %236 : vector<2x1xf32> to vector<2x256xf32>
    %238 = arith.mulf %235, %237 : vector<2x256xf32>
    %239 = arith.addf %234, %238 : vector<2x256xf32>
    %c0_95 = arith.constant 0 : index
    %c127_96 = arith.constant 127 : index
    %240 = vector.load %arg10[%c0_95, %c127_96] : memref<2x435xf32, #tpu.memory_space<vmem>>, vector<2x256xf32>
    %241 = vector.extract_strided_slice %130 {offsets = [0, 23], sizes = [2, 1], strides = [1, 1]} : vector<2x49xf32> to vector<2x1xf32>
    %242 = vector.broadcast %241 : vector<2x1xf32> to vector<2x256xf32>
    %243 = arith.mulf %240, %242 : vector<2x256xf32>
    %244 = arith.addf %239, %243 : vector<2x256xf32>
    %c0_97 = arith.constant 0 : index
    %c143_98 = arith.constant 143 : index
    %245 = vector.load %arg10[%c0_97, %c143_98] : memref<2x435xf32, #tpu.memory_space<vmem>>, vector<2x256xf32>
    %246 = vector.extract_strided_slice %130 {offsets = [0, 30], sizes = [2, 1], strides = [1, 1]} : vector<2x49xf32> to vector<2x1xf32>
    %247 = vector.broadcast %246 : vector<2x1xf32> to vector<2x256xf32>
    %248 = arith.mulf %245, %247 : vector<2x256xf32>
    %249 = arith.addf %244, %248 : vector<2x256xf32>
    %c0_99 = arith.constant 0 : index
    %c159 = arith.constant 159 : index
    %250 = vector.load %arg10[%c0_99, %c159] : memref<2x435xf32, #tpu.memory_space<vmem>>, vector<2x256xf32>
    %251 = vector.extract_strided_slice %130 {offsets = [0, 37], sizes = [2, 1], strides = [1, 1]} : vector<2x49xf32> to vector<2x1xf32>
    %252 = vector.broadcast %251 : vector<2x1xf32> to vector<2x256xf32>
    %253 = arith.mulf %250, %252 : vector<2x256xf32>
    %254 = arith.addf %249, %253 : vector<2x256xf32>
    %c0_100 = arith.constant 0 : index
    %c175 = arith.constant 175 : index
    %255 = vector.load %arg10[%c0_100, %c175] : memref<2x435xf32, #tpu.memory_space<vmem>>, vector<2x256xf32>
    %256 = vector.extract_strided_slice %130 {offsets = [0, 44], sizes = [2, 1], strides = [1, 1]} : vector<2x49xf32> to vector<2x1xf32>
    %257 = vector.broadcast %256 : vector<2x1xf32> to vector<2x256xf32>
    %258 = arith.mulf %255, %257 : vector<2x256xf32>
    %259 = arith.addf %254, %258 : vector<2x256xf32>
    %c1_i32_101 = arith.constant 1 : i32
    %260 = vector.broadcast %c1_i32_101 : i32 to vector<1x256xi32>
    %261 = arith.cmpi sge, %129, %260 : vector<1x256xi32>
    %c16_i32_102 = arith.constant 16 : i32
    %262 = vector.broadcast %c16_i32_102 : i32 to vector<1x256xi32>
    %263 = arith.cmpi slt, %129, %262 : vector<1x256xi32>
    %264 = arith.andi %261, %263 : vector<1x256xi1>
    %cst_103 = arith.constant 0.000000e+00 : f32
    %265 = vector.shape_cast %264 : vector<1x256xi1> to vector<1x256xi1>
    %266 = vector.broadcast %265 : vector<1x256xi1> to vector<2x256xi1>
    %267 = vector.broadcast %cst_103 : f32 to vector<2x256xf32>
    %268 = arith.select %266, %259, %267 : vector<2x256xi1>, vector<2x256xf32>
    %269 = arith.addf %223, %268 : vector<2x256xf32>
    %cst_104 = arith.constant 0.000000e+00 : f32
    %270 = vector.broadcast %cst_104 : f32 to vector<2x256xf32>
    %c0_105 = arith.constant 0 : index
    %c80 = arith.constant 80 : index
    %271 = vector.load %arg10[%c0_105, %c80] : memref<2x435xf32, #tpu.memory_space<vmem>>, vector<2x256xf32>
    %272 = vector.extract_strided_slice %130 {offsets = [0, 3], sizes = [2, 1], strides = [1, 1]} : vector<2x49xf32> to vector<2x1xf32>
    %273 = vector.broadcast %272 : vector<2x1xf32> to vector<2x256xf32>
    %274 = arith.mulf %271, %273 : vector<2x256xf32>
    %275 = arith.addf %270, %274 : vector<2x256xf32>
    %c0_106 = arith.constant 0 : index
    %c96 = arith.constant 96 : index
    %276 = vector.load %arg10[%c0_106, %c96] : memref<2x435xf32, #tpu.memory_space<vmem>>, vector<2x256xf32>
    %277 = vector.extract_strided_slice %130 {offsets = [0, 10], sizes = [2, 1], strides = [1, 1]} : vector<2x49xf32> to vector<2x1xf32>
    %278 = vector.broadcast %277 : vector<2x1xf32> to vector<2x256xf32>
    %279 = arith.mulf %276, %278 : vector<2x256xf32>
    %280 = arith.addf %275, %279 : vector<2x256xf32>
    %c0_107 = arith.constant 0 : index
    %c112_108 = arith.constant 112 : index
    %281 = vector.load %arg10[%c0_107, %c112_108] : memref<2x435xf32, #tpu.memory_space<vmem>>, vector<2x256xf32>
    %282 = vector.extract_strided_slice %130 {offsets = [0, 17], sizes = [2, 1], strides = [1, 1]} : vector<2x49xf32> to vector<2x1xf32>
    %283 = vector.broadcast %282 : vector<2x1xf32> to vector<2x256xf32>
    %284 = arith.mulf %281, %283 : vector<2x256xf32>
    %285 = arith.addf %280, %284 : vector<2x256xf32>
    %c0_109 = arith.constant 0 : index
    %c128_110 = arith.constant 128 : index
    %286 = vector.load %arg10[%c0_109, %c128_110] : memref<2x435xf32, #tpu.memory_space<vmem>>, vector<2x256xf32>
    %287 = vector.extract_strided_slice %130 {offsets = [0, 24], sizes = [2, 1], strides = [1, 1]} : vector<2x49xf32> to vector<2x1xf32>
    %288 = vector.broadcast %287 : vector<2x1xf32> to vector<2x256xf32>
    %289 = arith.mulf %286, %288 : vector<2x256xf32>
    %290 = arith.addf %285, %289 : vector<2x256xf32>
    %c0_111 = arith.constant 0 : index
    %c144_112 = arith.constant 144 : index
    %291 = vector.load %arg10[%c0_111, %c144_112] : memref<2x435xf32, #tpu.memory_space<vmem>>, vector<2x256xf32>
    %292 = vector.extract_strided_slice %130 {offsets = [0, 31], sizes = [2, 1], strides = [1, 1]} : vector<2x49xf32> to vector<2x1xf32>
    %293 = vector.broadcast %292 : vector<2x1xf32> to vector<2x256xf32>
    %294 = arith.mulf %291, %293 : vector<2x256xf32>
    %295 = arith.addf %290, %294 : vector<2x256xf32>
    %c0_113 = arith.constant 0 : index
    %c160 = arith.constant 160 : index
    %296 = vector.load %arg10[%c0_113, %c160] : memref<2x435xf32, #tpu.memory_space<vmem>>, vector<2x256xf32>
    %297 = vector.extract_strided_slice %130 {offsets = [0, 38], sizes = [2, 1], strides = [1, 1]} : vector<2x49xf32> to vector<2x1xf32>
    %298 = vector.broadcast %297 : vector<2x1xf32> to vector<2x256xf32>
    %299 = arith.mulf %296, %298 : vector<2x256xf32>
    %300 = arith.addf %295, %299 : vector<2x256xf32>
    %c0_114 = arith.constant 0 : index
    %c176 = arith.constant 176 : index
    %301 = vector.load %arg10[%c0_114, %c176] : memref<2x435xf32, #tpu.memory_space<vmem>>, vector<2x256xf32>
    %302 = vector.extract_strided_slice %130 {offsets = [0, 45], sizes = [2, 1], strides = [1, 1]} : vector<2x49xf32> to vector<2x1xf32>
    %303 = vector.broadcast %302 : vector<2x1xf32> to vector<2x256xf32>
    %304 = arith.mulf %301, %303 : vector<2x256xf32>
    %305 = arith.addf %300, %304 : vector<2x256xf32>
    %306 = arith.addf %269, %305 : vector<2x256xf32>
    %cst_115 = arith.constant 0.000000e+00 : f32
    %307 = vector.broadcast %cst_115 : f32 to vector<2x256xf32>
    %c0_116 = arith.constant 0 : index
    %c81 = arith.constant 81 : index
    %308 = vector.load %arg10[%c0_116, %c81] : memref<2x435xf32, #tpu.memory_space<vmem>>, vector<2x256xf32>
    %309 = vector.extract_strided_slice %130 {offsets = [0, 4], sizes = [2, 1], strides = [1, 1]} : vector<2x49xf32> to vector<2x1xf32>
    %310 = vector.broadcast %309 : vector<2x1xf32> to vector<2x256xf32>
    %311 = arith.mulf %308, %310 : vector<2x256xf32>
    %312 = arith.addf %307, %311 : vector<2x256xf32>
    %c0_117 = arith.constant 0 : index
    %c97 = arith.constant 97 : index
    %313 = vector.load %arg10[%c0_117, %c97] : memref<2x435xf32, #tpu.memory_space<vmem>>, vector<2x256xf32>
    %314 = vector.extract_strided_slice %130 {offsets = [0, 11], sizes = [2, 1], strides = [1, 1]} : vector<2x49xf32> to vector<2x1xf32>
    %315 = vector.broadcast %314 : vector<2x1xf32> to vector<2x256xf32>
    %316 = arith.mulf %313, %315 : vector<2x256xf32>
    %317 = arith.addf %312, %316 : vector<2x256xf32>
    %c0_118 = arith.constant 0 : index
    %c113_119 = arith.constant 113 : index
    %318 = vector.load %arg10[%c0_118, %c113_119] : memref<2x435xf32, #tpu.memory_space<vmem>>, vector<2x256xf32>
    %319 = vector.extract_strided_slice %130 {offsets = [0, 18], sizes = [2, 1], strides = [1, 1]} : vector<2x49xf32> to vector<2x1xf32>
    %320 = vector.broadcast %319 : vector<2x1xf32> to vector<2x256xf32>
    %321 = arith.mulf %318, %320 : vector<2x256xf32>
    %322 = arith.addf %317, %321 : vector<2x256xf32>
    %c0_120 = arith.constant 0 : index
    %c129_121 = arith.constant 129 : index
    %323 = vector.load %arg10[%c0_120, %c129_121] : memref<2x435xf32, #tpu.memory_space<vmem>>, vector<2x256xf32>
    %324 = vector.extract_strided_slice %130 {offsets = [0, 25], sizes = [2, 1], strides = [1, 1]} : vector<2x49xf32> to vector<2x1xf32>
    %325 = vector.broadcast %324 : vector<2x1xf32> to vector<2x256xf32>
    %326 = arith.mulf %323, %325 : vector<2x256xf32>
    %327 = arith.addf %322, %326 : vector<2x256xf32>
    %c0_122 = arith.constant 0 : index
    %c145_123 = arith.constant 145 : index
    %328 = vector.load %arg10[%c0_122, %c145_123] : memref<2x435xf32, #tpu.memory_space<vmem>>, vector<2x256xf32>
    %329 = vector.extract_strided_slice %130 {offsets = [0, 32], sizes = [2, 1], strides = [1, 1]} : vector<2x49xf32> to vector<2x1xf32>
    %330 = vector.broadcast %329 : vector<2x1xf32> to vector<2x256xf32>
    %331 = arith.mulf %328, %330 : vector<2x256xf32>
    %332 = arith.addf %327, %331 : vector<2x256xf32>
    %c0_124 = arith.constant 0 : index
    %c161 = arith.constant 161 : index
    %333 = vector.load %arg10[%c0_124, %c161] : memref<2x435xf32, #tpu.memory_space<vmem>>, vector<2x256xf32>
    %334 = vector.extract_strided_slice %130 {offsets = [0, 39], sizes = [2, 1], strides = [1, 1]} : vector<2x49xf32> to vector<2x1xf32>
    %335 = vector.broadcast %334 : vector<2x1xf32> to vector<2x256xf32>
    %336 = arith.mulf %333, %335 : vector<2x256xf32>
    %337 = arith.addf %332, %336 : vector<2x256xf32>
    %c0_125 = arith.constant 0 : index
    %c177 = arith.constant 177 : index
    %338 = vector.load %arg10[%c0_125, %c177] : memref<2x435xf32, #tpu.memory_space<vmem>>, vector<2x256xf32>
    %339 = vector.extract_strided_slice %130 {offsets = [0, 46], sizes = [2, 1], strides = [1, 1]} : vector<2x49xf32> to vector<2x1xf32>
    %340 = vector.broadcast %339 : vector<2x1xf32> to vector<2x256xf32>
    %341 = arith.mulf %338, %340 : vector<2x256xf32>
    %342 = arith.addf %337, %341 : vector<2x256xf32>
    %c0_i32_126 = arith.constant 0 : i32
    %343 = vector.broadcast %c0_i32_126 : i32 to vector<1x256xi32>
    %344 = arith.cmpi sge, %129, %343 : vector<1x256xi32>
    %c15_i32_127 = arith.constant 15 : i32
    %345 = vector.broadcast %c15_i32_127 : i32 to vector<1x256xi32>
    %346 = arith.cmpi slt, %129, %345 : vector<1x256xi32>
    %347 = arith.andi %344, %346 : vector<1x256xi1>
    %cst_128 = arith.constant 0.000000e+00 : f32
    %348 = vector.shape_cast %347 : vector<1x256xi1> to vector<1x256xi1>
    %349 = vector.broadcast %348 : vector<1x256xi1> to vector<2x256xi1>
    %350 = vector.broadcast %cst_128 : f32 to vector<2x256xf32>
    %351 = arith.select %349, %342, %350 : vector<2x256xi1>, vector<2x256xf32>
    %352 = arith.addf %306, %351 : vector<2x256xf32>
    %cst_129 = arith.constant 0.000000e+00 : f32
    %353 = vector.broadcast %cst_129 : f32 to vector<2x256xf32>
    %c0_130 = arith.constant 0 : index
    %c82 = arith.constant 82 : index
    %354 = vector.load %arg10[%c0_130, %c82] : memref<2x435xf32, #tpu.memory_space<vmem>>, vector<2x256xf32>
    %355 = vector.extract_strided_slice %130 {offsets = [0, 5], sizes = [2, 1], strides = [1, 1]} : vector<2x49xf32> to vector<2x1xf32>
    %356 = vector.broadcast %355 : vector<2x1xf32> to vector<2x256xf32>
    %357 = arith.mulf %354, %356 : vector<2x256xf32>
    %358 = arith.addf %353, %357 : vector<2x256xf32>
    %c0_131 = arith.constant 0 : index
    %c98 = arith.constant 98 : index
    %359 = vector.load %arg10[%c0_131, %c98] : memref<2x435xf32, #tpu.memory_space<vmem>>, vector<2x256xf32>
    %360 = vector.extract_strided_slice %130 {offsets = [0, 12], sizes = [2, 1], strides = [1, 1]} : vector<2x49xf32> to vector<2x1xf32>
    %361 = vector.broadcast %360 : vector<2x1xf32> to vector<2x256xf32>
    %362 = arith.mulf %359, %361 : vector<2x256xf32>
    %363 = arith.addf %358, %362 : vector<2x256xf32>
    %c0_132 = arith.constant 0 : index
    %c114 = arith.constant 114 : index
    %364 = vector.load %arg10[%c0_132, %c114] : memref<2x435xf32, #tpu.memory_space<vmem>>, vector<2x256xf32>
    %365 = vector.extract_strided_slice %130 {offsets = [0, 19], sizes = [2, 1], strides = [1, 1]} : vector<2x49xf32> to vector<2x1xf32>
    %366 = vector.broadcast %365 : vector<2x1xf32> to vector<2x256xf32>
    %367 = arith.mulf %364, %366 : vector<2x256xf32>
    %368 = arith.addf %363, %367 : vector<2x256xf32>
    %c0_133 = arith.constant 0 : index
    %c130 = arith.constant 130 : index
    %369 = vector.load %arg10[%c0_133, %c130] : memref<2x435xf32, #tpu.memory_space<vmem>>, vector<2x256xf32>
    %370 = vector.extract_strided_slice %130 {offsets = [0, 26], sizes = [2, 1], strides = [1, 1]} : vector<2x49xf32> to vector<2x1xf32>
    %371 = vector.broadcast %370 : vector<2x1xf32> to vector<2x256xf32>
    %372 = arith.mulf %369, %371 : vector<2x256xf32>
    %373 = arith.addf %368, %372 : vector<2x256xf32>
    %c0_134 = arith.constant 0 : index
    %c146 = arith.constant 146 : index
    %374 = vector.load %arg10[%c0_134, %c146] : memref<2x435xf32, #tpu.memory_space<vmem>>, vector<2x256xf32>
    %375 = vector.extract_strided_slice %130 {offsets = [0, 33], sizes = [2, 1], strides = [1, 1]} : vector<2x49xf32> to vector<2x1xf32>
    %376 = vector.broadcast %375 : vector<2x1xf32> to vector<2x256xf32>
    %377 = arith.mulf %374, %376 : vector<2x256xf32>
    %378 = arith.addf %373, %377 : vector<2x256xf32>
    %c0_135 = arith.constant 0 : index
    %c162 = arith.constant 162 : index
    %379 = vector.load %arg10[%c0_135, %c162] : memref<2x435xf32, #tpu.memory_space<vmem>>, vector<2x256xf32>
    %380 = vector.extract_strided_slice %130 {offsets = [0, 40], sizes = [2, 1], strides = [1, 1]} : vector<2x49xf32> to vector<2x1xf32>
    %381 = vector.broadcast %380 : vector<2x1xf32> to vector<2x256xf32>
    %382 = arith.mulf %379, %381 : vector<2x256xf32>
    %383 = arith.addf %378, %382 : vector<2x256xf32>
    %c0_136 = arith.constant 0 : index
    %c178 = arith.constant 178 : index
    %384 = vector.load %arg10[%c0_136, %c178] : memref<2x435xf32, #tpu.memory_space<vmem>>, vector<2x256xf32>
    %385 = vector.extract_strided_slice %130 {offsets = [0, 47], sizes = [2, 1], strides = [1, 1]} : vector<2x49xf32> to vector<2x1xf32>
    %386 = vector.broadcast %385 : vector<2x1xf32> to vector<2x256xf32>
    %387 = arith.mulf %384, %386 : vector<2x256xf32>
    %388 = arith.addf %383, %387 : vector<2x256xf32>
    %c0_i32_137 = arith.constant 0 : i32
    %389 = vector.broadcast %c0_i32_137 : i32 to vector<1x256xi32>
    %390 = arith.cmpi sge, %129, %389 : vector<1x256xi32>
    %c14_i32 = arith.constant 14 : i32
    %391 = vector.broadcast %c14_i32 : i32 to vector<1x256xi32>
    %392 = arith.cmpi slt, %129, %391 : vector<1x256xi32>
    %393 = arith.andi %390, %392 : vector<1x256xi1>
    %cst_138 = arith.constant 0.000000e+00 : f32
    %394 = vector.shape_cast %393 : vector<1x256xi1> to vector<1x256xi1>
    %395 = vector.broadcast %394 : vector<1x256xi1> to vector<2x256xi1>
    %396 = vector.broadcast %cst_138 : f32 to vector<2x256xf32>
    %397 = arith.select %395, %388, %396 : vector<2x256xi1>, vector<2x256xf32>
    %398 = arith.addf %352, %397 : vector<2x256xf32>
    %cst_139 = arith.constant 0.000000e+00 : f32
    %399 = vector.broadcast %cst_139 : f32 to vector<2x256xf32>
    %c0_140 = arith.constant 0 : index
    %c83 = arith.constant 83 : index
    %400 = vector.load %arg10[%c0_140, %c83] : memref<2x435xf32, #tpu.memory_space<vmem>>, vector<2x256xf32>
    %401 = vector.extract_strided_slice %130 {offsets = [0, 6], sizes = [2, 1], strides = [1, 1]} : vector<2x49xf32> to vector<2x1xf32>
    %402 = vector.broadcast %401 : vector<2x1xf32> to vector<2x256xf32>
    %403 = arith.mulf %400, %402 : vector<2x256xf32>
    %404 = arith.addf %399, %403 : vector<2x256xf32>
    %c0_141 = arith.constant 0 : index
    %c99 = arith.constant 99 : index
    %405 = vector.load %arg10[%c0_141, %c99] : memref<2x435xf32, #tpu.memory_space<vmem>>, vector<2x256xf32>
    %406 = vector.extract_strided_slice %130 {offsets = [0, 13], sizes = [2, 1], strides = [1, 1]} : vector<2x49xf32> to vector<2x1xf32>
    %407 = vector.broadcast %406 : vector<2x1xf32> to vector<2x256xf32>
    %408 = arith.mulf %405, %407 : vector<2x256xf32>
    %409 = arith.addf %404, %408 : vector<2x256xf32>
    %c0_142 = arith.constant 0 : index
    %c115 = arith.constant 115 : index
    %410 = vector.load %arg10[%c0_142, %c115] : memref<2x435xf32, #tpu.memory_space<vmem>>, vector<2x256xf32>
    %411 = vector.extract_strided_slice %130 {offsets = [0, 20], sizes = [2, 1], strides = [1, 1]} : vector<2x49xf32> to vector<2x1xf32>
    %412 = vector.broadcast %411 : vector<2x1xf32> to vector<2x256xf32>
    %413 = arith.mulf %410, %412 : vector<2x256xf32>
    %414 = arith.addf %409, %413 : vector<2x256xf32>
    %c0_143 = arith.constant 0 : index
    %c131 = arith.constant 131 : index
    %415 = vector.load %arg10[%c0_143, %c131] : memref<2x435xf32, #tpu.memory_space<vmem>>, vector<2x256xf32>
    %416 = vector.extract_strided_slice %130 {offsets = [0, 27], sizes = [2, 1], strides = [1, 1]} : vector<2x49xf32> to vector<2x1xf32>
    %417 = vector.broadcast %416 : vector<2x1xf32> to vector<2x256xf32>
    %418 = arith.mulf %415, %417 : vector<2x256xf32>
    %419 = arith.addf %414, %418 : vector<2x256xf32>
    %c0_144 = arith.constant 0 : index
    %c147 = arith.constant 147 : index
    %420 = vector.load %arg10[%c0_144, %c147] : memref<2x435xf32, #tpu.memory_space<vmem>>, vector<2x256xf32>
    %421 = vector.extract_strided_slice %130 {offsets = [0, 34], sizes = [2, 1], strides = [1, 1]} : vector<2x49xf32> to vector<2x1xf32>
    %422 = vector.broadcast %421 : vector<2x1xf32> to vector<2x256xf32>
    %423 = arith.mulf %420, %422 : vector<2x256xf32>
    %424 = arith.addf %419, %423 : vector<2x256xf32>
    %c0_145 = arith.constant 0 : index
    %c163 = arith.constant 163 : index
    %425 = vector.load %arg10[%c0_145, %c163] : memref<2x435xf32, #tpu.memory_space<vmem>>, vector<2x256xf32>
    %426 = vector.extract_strided_slice %130 {offsets = [0, 41], sizes = [2, 1], strides = [1, 1]} : vector<2x49xf32> to vector<2x1xf32>
    %427 = vector.broadcast %426 : vector<2x1xf32> to vector<2x256xf32>
    %428 = arith.mulf %425, %427 : vector<2x256xf32>
    %429 = arith.addf %424, %428 : vector<2x256xf32>
    %c0_146 = arith.constant 0 : index
    %c179 = arith.constant 179 : index
    %430 = vector.load %arg10[%c0_146, %c179] : memref<2x435xf32, #tpu.memory_space<vmem>>, vector<2x256xf32>
    %431 = vector.extract_strided_slice %130 {offsets = [0, 48], sizes = [2, 1], strides = [1, 1]} : vector<2x49xf32> to vector<2x1xf32>
    %432 = vector.broadcast %431 : vector<2x1xf32> to vector<2x256xf32>
    %433 = arith.mulf %430, %432 : vector<2x256xf32>
    %434 = arith.addf %429, %433 : vector<2x256xf32>
    %c0_i32_147 = arith.constant 0 : i32
    %435 = vector.broadcast %c0_i32_147 : i32 to vector<1x256xi32>
    %436 = arith.cmpi sge, %129, %435 : vector<1x256xi32>
    %c13_i32 = arith.constant 13 : i32
    %437 = vector.broadcast %c13_i32 : i32 to vector<1x256xi32>
    %438 = arith.cmpi slt, %129, %437 : vector<1x256xi32>
    %439 = arith.andi %436, %438 : vector<1x256xi1>
    %cst_148 = arith.constant 0.000000e+00 : f32
    %440 = vector.shape_cast %439 : vector<1x256xi1> to vector<1x256xi1>
    %441 = vector.broadcast %440 : vector<1x256xi1> to vector<2x256xi1>
    %442 = vector.broadcast %cst_148 : f32 to vector<2x256xf32>
    %443 = arith.select %441, %434, %442 : vector<2x256xi1>, vector<2x256xf32>
    %444 = arith.addf %398, %443 : vector<2x256xf32>
    %445 = vector.extract_strided_slice %444 {offsets = [0, 0], sizes = [1, 256], strides = [1, 1]} : vector<2x256xf32> to vector<1x256xf32>
    %446 = vector.extract_strided_slice %444 {offsets = [1, 0], sizes = [1, 256], strides = [1, 1]} : vector<2x256xf32> to vector<1x256xf32>
    %447 = arith.addf %445, %446 : vector<1x256xf32>
    %c0_149 = arith.constant 0 : index
    %448 = memref.load %arg6[%c0_149] : memref<1xf32, #tpu.memory_space<smem>>
    %449 = vector.broadcast %448 : f32 to vector<1x256xf32>
    %450 = arith.addf %447, %449 : vector<1x256xf32>
    %451 = arith.negf %450 : vector<1x256xf32>
    %452 = math.exp %451 : vector<1x256xf32>
    %cst_150 = arith.constant 1.000000e+00 : f32
    %453 = vector.broadcast %cst_150 : f32 to vector<1x256xf32>
    %454 = arith.addf %453, %452 : vector<1x256xf32>
    %455 = arith.divf %453, %454 : vector<1x256xf32>
    %c0_151 = arith.constant 0 : index
    %c0_152 = arith.constant 0 : index
    %c0_153 = arith.constant 0 : index
    %456 = vector.load %arg8[%c0_151, %c0_152, %c0_153] : memref<1x1x256xf32, #tpu.memory_space<vmem>>, vector<1x1x256xf32>
    %457 = vector.shape_cast %456 : vector<1x1x256xf32> to vector<1x256xf32>
    %458 = vector.shape_cast %455 : vector<1x256xf32> to vector<1x1x256xf32>
    tpu.vector_store %arg8[%c0_151, %c0_152, %c0_153], %458 {strides = array<i32>} : memref<1x1x256xf32, #tpu.memory_space<vmem>>, vector<1x1x256xf32>,
    return
  }
  func.func @transform_0(%arg0: i32) -> (i32, i32, i32) {
    %c0_i32 = arith.constant 0 : i32
    %c0_i32_0 = arith.constant 0 : i32
    %c0_i32_1 = arith.constant 0 : i32
    return %arg0, %c0_i32, %c0_i32_0 : i32, i32, i32
  }
  func.func @transform_1(%arg0: i32) -> (i32, i32) {
    %c0_i32 = arith.constant 0 : i32
    %c0_i32_0 = arith.constant 0 : i32
    %c0_i32_1 = arith.constant 0 : i32
    return %c0_i32, %c0_i32_0 : i32, i32
  }
  func.func @transform_2(%arg0: i32) -> (i32, i32) {
    %c0_i32 = arith.constant 0 : i32
    %c0_i32_0 = arith.constant 0 : i32
    %c0_i32_1 = arith.constant 0 : i32
    return %c0_i32, %c0_i32_0 : i32, i32
  }
  func.func @transform_3(%arg0: i32) -> (i32, i32) {
    %c0_i32 = arith.constant 0 : i32
    %c0_i32_0 = arith.constant 0 : i32
    %c0_i32_1 = arith.constant 0 : i32
    return %c0_i32, %c0_i32_0 : i32, i32
  }
  func.func @transform_4(%arg0: i32) -> (i32, i32) {
    %c0_i32 = arith.constant 0 : i32
    %c0_i32_0 = arith.constant 0 : i32
    %c0_i32_1 = arith.constant 0 : i32
    return %c0_i32, %c0_i32_0 : i32, i32
  }
  func.func @transform_5(%arg0: i32) -> i32 {
    %c0_i32 = arith.constant 0 : i32
    %c0_i32_0 = arith.constant 0 : i32
    return %c0_i32 : i32
  }
  func.func @transform_6(%arg0: i32) -> (i32, i32, i32) {
    %c0_i32 = arith.constant 0 : i32
    %c0_i32_0 = arith.constant 0 : i32
    %c0_i32_1 = arith.constant 0 : i32
    return %arg0, %c0_i32, %c0_i32_0 : i32, i32, i32
  }
  func.func @transform_7(%arg0: i32) -> (i32, i32, i32) {
    %c0_i32 = arith.constant 0 : i32
    %c0_i32_0 = arith.constant 0 : i32
    %c0_i32_1 = arith.constant 0 : i32
    return %arg0, %c0_i32, %c0_i32_0 : i32, i32, i32
  }
}

</mosaic_0001>

<llo_original>
// kernel: spatial_attention.1
$region0: #{spatial_attention.1}
  #allocation0 [shape = 'u32[]', space=smem, size = 0x4, offset = 0x4, fixed_abs, tag = 'smem constant byte address 0x4 - core index']
  #allocation1 [shape = 'u32[144,128]{1,0:T(1,128)}', space=vmem, size = 0x12000, scoped, tag = 'internal scratch']
  #allocation2 [shape = 'f32[8,401]{1,0:T(8,128)}', space=vmem, size = 0x4000, scoped, tag = 'scratch operand']
  #allocation3 [shape = 'f32[2,435]{1,0:T(2,128)}', space=vmem, size = 0x1000, scoped, tag = 'scratch operand']
  #allocation4 [shape = 'f32[1]{0:T(128)S(6)}', space=smem, size = 0x200, scoped, tag = 'scoped memory for spatial_attention.1']
  %s0 = inlined_call_operand.vmem [shape: f32[2,4,256], index: 0, kind: input, shape index: {}]
  %s1 = inlined_call_operand.vmem [shape: f32[8,72], index: 1, kind: input, shape index: {}]
  %s2 = inlined_call_operand.vmem [shape: f32[8,1], index: 2, kind: input, shape index: {}]
  %s3 = inlined_call_operand.vmem [shape: f32[8,1], index: 3, kind: input, shape index: {}]
  %s4 = inlined_call_operand.vmem [shape: f32[2,49], index: 4, kind: input, shape index: {}]
  %s5 = inlined_call_operand.<no memory space> [shape: f32[1], index: 5, kind: input, shape index: {}]
  %s6 = inlined_call_operand.vmem [shape: f32[2,8,256], index: 6, kind: output, shape index: {0}]
  %s7 = inlined_call_operand.vmem [shape: f32[2,1,256], index: 7, kind: output, shape index: {1}]
  %8 = xla_tuple %s6, %s7
  %s9 = sld [smem:[#allocation0]]
  $region65: #{spatial_attention.1} parent=0
    _
  %s11 = ssub.s32 1, %s9
  %s12 = scalar_select 0, %s11, %s9
  %13 = sst [smem:[#allocation4]] %s5
  loop: start=0, step=1, limit=4
  $region2: #{spatial_attention.1} parent=0 // loop_pre_header
    _
  $region3: #{spatial_attention.1} parent=0 // loop_header
    %s15 = sphi 0, %s19
    %p16 = scmp.ge.s32.totalorder %s15, 4
    %s25 = sphi 0, %s27
    %s28 = sphi 0, %s25
    %s29 = sphi 0, %s28
    %s45 = sphi 0, %s29
    %s49 = sphi 0, %s49
    %s51 = sphi 0, %s49
    %s52 = sphi 0, %s51
    %s66 = sphi 0, %s52
    %s70 = sphi 0, %s70
    %s72 = sphi 0, %s70
    %s73 = sphi 0, %s72
    %s87 = sphi 0, %s73
    %s91 = sphi 0, %s91
    %s93 = sphi 0, %s91
    %s94 = sphi 0, %s93
    %s108 = sphi 0, %s94
    %s112 = sphi 0, %s112
    %s114 = sphi 0, %s112
    %s115 = sphi 0, %s114
    %s129 = sphi 0, %s115
    %s133 = sphi 0, %s133
    %s135 = sphi 0, %s133
    %s136 = sphi 0, %s135
    %s150 = sphi 0, %s136
    %s156 = sphi 0, %s158
    %s159 = sphi 0, %s156
    %s160 = sphi 0, %s159
    %s176 = sphi 0, %s160
    %s182 = sphi 0, %s184
    %s185 = sphi 0, %s182
    %s186 = sphi 0, %s185
    %s202 = sphi 0, %s186
  $region4: #{spatial_attention.1} parent=0 // loop_header_branch
    %18 = sbr.rel (%p16) target = $region8
  $region5: #{spatial_attention.1} parent=0 // loop_body
    %s20 = ssub.s32 %s15, 1
    %s21 = ssub.s32 %s15, 2
    %s22 = sadd.s32 %s15, 1
    %s23 = ssub.s32 %s15, %s22
    %p24 = scmp.eq.s32.totalorder %s23, 0
    %s26 = sadd.s32 %s25, 1
    %s27 = scalar_select %p24, %s25, %s26
    %p30 = pneg %p24
    %p31 = scmp.eq.s32.totalorder %s15, 1
    %p32 = por %p30, %p31
    %p33 = scmp.ne.s32.totalorder %s25, %s28
    %p34 = scmp.eq.s32.totalorder %s15, 0
    %p35 = por %p33, %p34
    %p36 = scmp.ne.s32.totalorder %s25, %s28
    %p37 = scmp.eq.s32.totalorder %s20, 1
    %p38 = por %p36, %p37
    %p39 = scmp.ne.s32.totalorder %s28, %s29
    %p40 = scmp.eq.s32.totalorder %s20, 0
    %p41 = por %p39, %p40
    %p42 = scmp.ne.s32.totalorder %s28, %s29
    %p43 = scmp.eq.s32.totalorder %s21, 1
    %p44 = por %p42, %p43
    %p46 = scmp.ne.s32.totalorder %s29, %s45
    %p47 = scmp.eq.s32.totalorder %s21, 0
    %p48 = por %p46, %p47
    %s50 = sadd.s32 %s49, 1
    %p53 = scmp.eq.s32.totalorder %s15, 1
    %p54 = scmp.ne.s32.totalorder %s49, %s51
    %p55 = scmp.eq.s32.totalorder %s15, 0
    %p56 = por %p54, %p55
    %p57 = scmp.ne.s32.totalorder %s49, %s51
    %p58 = scmp.eq.s32.totalorder %s20, 1
    %p59 = por %p57, %p58
    %p60 = scmp.ne.s32.totalorder %s51, %s52
    %p61 = scmp.eq.s32.totalorder %s20, 0
    %p62 = por %p60, %p61
    %p63 = scmp.ne.s32.totalorder %s51, %s52
    %p64 = scmp.eq.s32.totalorder %s21, 1
    %p65 = por %p63, %p64
    %p67 = scmp.ne.s32.totalorder %s52, %s66
    %p68 = scmp.eq.s32.totalorder %s21, 0
    %p69 = por %p67, %p68
    %s71 = sadd.s32 %s70, 1
    %p74 = scmp.eq.s32.totalorder %s15, 1
    %p75 = scmp.ne.s32.totalorder %s70, %s72
    %p76 = scmp.eq.s32.totalorder %s15, 0
    %p77 = por %p75, %p76
    %p78 = scmp.ne.s32.totalorder %s70, %s72
    %p79 = scmp.eq.s32.totalorder %s20, 1
    %p80 = por %p78, %p79
    %p81 = scmp.ne.s32.totalorder %s72, %s73
    %p82 = scmp.eq.s32.totalorder %s20, 0
    %p83 = por %p81, %p82
    %p84 = scmp.ne.s32.totalorder %s72, %s73
    %p85 = scmp.eq.s32.totalorder %s21, 1
    %p86 = por %p84, %p85
    %p88 = scmp.ne.s32.totalorder %s73, %s87
    %p89 = scmp.eq.s32.totalorder %s21, 0
    %p90 = por %p88, %p89
    %s92 = sadd.s32 %s91, 1
    %p95 = scmp.eq.s32.totalorder %s15, 1
    %p96 = scmp.ne.s32.totalorder %s91, %s93
    %p97 = scmp.eq.s32.totalorder %s15, 0
    %p98 = por %p96, %p97
    %p99 = scmp.ne.s32.totalorder %s91, %s93
    %p100 = scmp.eq.s32.totalorder %s20, 1
    %p101 = por %p99, %p100
    %p102 = scmp.ne.s32.totalorder %s93, %s94
    %p103 = scmp.eq.s32.totalorder %s20, 0
    %p104 = por %p102, %p103
    %p105 = scmp.ne.s32.totalorder %s93, %s94
    %p106 = scmp.eq.s32.totalorder %s21, 1
    %p107 = por %p105, %p106
    %p109 = scmp.ne.s32.totalorder %s94, %s108
    %p110 = scmp.eq.s32.totalorder %s21, 0
    %p111 = por %p109, %p110
    %s113 = sadd.s32 %s112, 1
    %p116 = scmp.eq.s32.totalorder %s15, 1
    %p117 = scmp.ne.s32.totalorder %s112, %s114
    %p118 = scmp.eq.s32.totalorder %s15, 0
    %p119 = por %p117, %p118
    %p120 = scmp.ne.s32.totalorder %s112, %s114
    %p121 = scmp.eq.s32.totalorder %s20, 1
    %p122 = por %p120, %p121
    %p123 = scmp.ne.s32.totalorder %s114, %s115
    %p124 = scmp.eq.s32.totalorder %s20, 0
    %p125 = por %p123, %p124
    %p126 = scmp.ne.s32.totalorder %s114, %s115
    %p127 = scmp.eq.s32.totalorder %s21, 1
    %p128 = por %p126, %p127
    %p130 = scmp.ne.s32.totalorder %s115, %s129
    %p131 = scmp.eq.s32.totalorder %s21, 0
    %p132 = por %p130, %p131
    %s134 = sadd.s32 %s133, 1
    %p137 = scmp.eq.s32.totalorder %s15, 1
    %p138 = scmp.ne.s32.totalorder %s133, %s135
    %p139 = scmp.eq.s32.totalorder %s15, 0
    %p140 = por %p138, %p139
    %p141 = scmp.ne.s32.totalorder %s133, %s135
    %p142 = scmp.eq.s32.totalorder %s20, 1
    %p143 = por %p141, %p142
    %p144 = scmp.ne.s32.totalorder %s135, %s136
    %p145 = scmp.eq.s32.totalorder %s20, 0
    %p146 = por %p144, %p145
    %p147 = scmp.ne.s32.totalorder %s135, %s136
    %p148 = scmp.eq.s32.totalorder %s21, 1
    %p149 = por %p147, %p148
    %p151 = scmp.ne.s32.totalorder %s136, %s150
    %p152 = scmp.eq.s32.totalorder %s21, 0
    %p153 = por %p151, %p152
    %s154 = ssub.s32 %s15, %s22
    %p155 = scmp.eq.s32.totalorder %s154, 0
    %s157 = sadd.s32 %s156, 1
    %s158 = scalar_select %p155, %s156, %s157
    %p161 = pneg %p155
    %p162 = scmp.eq.s32.totalorder %s15, 1
    %p163 = por %p161, %p162
    %p164 = scmp.ne.s32.totalorder %s156, %s159
    %p165 = scmp.eq.s32.totalorder %s15, 0
    %p166 = por %p164, %p165
    %p167 = scmp.ne.s32.totalorder %s156, %s159
    %p168 = scmp.eq.s32.totalorder %s20, 1
    %p169 = por %p167, %p168
    %p170 = scmp.ne.s32.totalorder %s159, %s160
    %p171 = scmp.eq.s32.totalorder %s20, 0
    %p172 = por %p170, %p171
    %p173 = scmp.ne.s32.totalorder %s159, %s160
    %p174 = scmp.eq.s32.totalorder %s21, 1
    %p175 = por %p173, %p174
    %p177 = scmp.ne.s32.totalorder %s160, %s176
    %p178 = scmp.eq.s32.totalorder %s21, 0
    %p179 = por %p177, %p178
    %s180 = ssub.s32 %s15, %s22
    %p181 = scmp.eq.s32.totalorder %s180, 0
    %s183 = sadd.s32 %s182, 1
    %s184 = scalar_select %p181, %s182, %s183
    %p187 = pneg %p181
    %p188 = scmp.eq.s32.totalorder %s15, 1
    %p189 = por %p187, %p188
    %p190 = scmp.ne.s32.totalorder %s182, %s185
    %p191 = scmp.eq.s32.totalorder %s15, 0
    %p192 = por %p190, %p191
    %p193 = scmp.ne.s32.totalorder %s182, %s185
    %p194 = scmp.eq.s32.totalorder %s20, 1
    %p195 = por %p193, %p194
    %p196 = scmp.ne.s32.totalorder %s185, %s186
    %p197 = scmp.eq.s32.totalorder %s20, 0
    %p198 = por %p196, %p197
    %p199 = scmp.ne.s32.totalorder %s185, %s186
    %p200 = scmp.eq.s32.totalorder %s21, 1
    %p201 = por %p199, %p200
    %p203 = scmp.ne.s32.totalorder %s186, %s202
    %p204 = scmp.eq.s32.totalorder %s21, 0
    %p205 = por %p203, %p204
    %p206 = scmp.le.s32.totalorder 1, %s15
    %p207 = scmp.lt.s32.totalorder %s15, 3
    %p208 = pnand %p206, %p207
    %p209 = pneg %p208
    // Predicated region
    $region9: #{spatial_attention.1} parent=5 // pred_check
      _
    $region10: #{spatial_attention.1} parent=5 // pred_check_branch
      %211 = sbr.rel (%p208) target = $region12
    $region11: #{spatial_attention.1} parent=5 // pred_region
      %s212 = ssub.s32 %s15, 1
      // Predicated region
      $region13: #{spatial_attention.1} parent=11 // pred_check
        %p213 = pneg %p62
      $region14: #{spatial_attention.1} parent=11 // pred_check_branch
        %215 = sbr.rel (%p213) target = $region16
      $region15: #{spatial_attention.1} parent=11 // pred_region
        _
      $region16: #{spatial_attention.1} parent=11 // pred_fallthru
        _
      // Predicated region
      $region17: #{spatial_attention.1} parent=11 // pred_check
        %p216 = pneg %p83
      $region18: #{spatial_attention.1} parent=11 // pred_check_branch
        %218 = sbr.rel (%p216) target = $region20
      $region19: #{spatial_attention.1} parent=11 // pred_region
        _
      $region20: #{spatial_attention.1} parent=11 // pred_fallthru
        _
      // Predicated region
      $region21: #{spatial_attention.1} parent=11 // pred_check
        %p219 = pneg %p104
      $region22: #{spatial_attention.1} parent=11 // pred_check_branch
        %221 = sbr.rel (%p219) target = $region24
      $region23: #{spatial_attention.1} parent=11 // pred_region
        _
      $region24: #{spatial_attention.1} parent=11 // pred_fallthru
        _
      // Predicated region
      $region25: #{spatial_attention.1} parent=11 // pred_check
        %p222 = pneg %p125
      $region26: #{spatial_attention.1} parent=11 // pred_check_branch
        %224 = sbr.rel (%p222) target = $region28
      $region27: #{spatial_attention.1} parent=11 // pred_region
        _
      $region28: #{spatial_attention.1} parent=11 // pred_fallthru
        _
      // Predicated region
      $region29: #{spatial_attention.1} parent=11 // pred_check
        %p225 = pneg %p146
      $region30: #{spatial_attention.1} parent=11 // pred_check_branch
        %227 = sbr.rel (%p225) target = $region32
      $region31: #{spatial_attention.1} parent=11 // pred_region
        _
      $region32: #{spatial_attention.1} parent=11 // pred_fallthru
        _
    $region12: #{spatial_attention.1} parent=5 // pred_fallthru
      _
    %p228 = scmp.lt.s32.totalorder %s15, 2
    // Predicated region
    $region33: #{spatial_attention.1} parent=5 // pred_check
      %p229 = pneg %p228
    $region34: #{spatial_attention.1} parent=5 // pred_check_branch
      %231 = sbr.rel (%p229) target = $region36
    $region35: #{spatial_attention.1} parent=5 // pred_region
      // Predicated region
      $region37: #{spatial_attention.1} parent=35 // pred_check
        %p232 = pneg %p35
      $region38: #{spatial_attention.1} parent=35 // pred_check_branch
        %234 = sbr.rel (%p232) target = $region40
      $region39: #{spatial_attention.1} parent=35 // pred_region
        %p235 = scmp.lt.s32.totalorder %s15, 1
        %s236 = scalar_select %p235, %s15, 1
        %s237 = smul.addr %s236, 2
        %s238 = smul.addr %s237, 4
        %s239 = scalar_lea.vmem %s0, %s238
      $region40: #{spatial_attention.1} parent=35 // pred_fallthru
        _
    $region36: #{spatial_attention.1} parent=5 // pred_fallthru
      _
    %p240 = scmp.le.s32.totalorder 1, %s15
    %p241 = scmp.lt.s32.totalorder %s15, 3
    %p242 = pnand %p240, %p241
    %p243 = pneg %p242
    // Predicated region
    $region41: #{spatial_attention.1} parent=5 // pred_check
      _
    $region42: #{spatial_attention.1} parent=5 // pred_check_branch
      %245 = sbr.rel (%p242) target = $region44
    $region43: #{spatial_attention.1} parent=5 // pred_region
      %s246 = ssub.s32 %s15, 1
      %p247 = scmp.lt.s32.totalorder %s20, 1
      %s248 = scalar_select %p247, %s20, 1
      %s249 = smul.addr %s248, 2
      %s250 = smul.addr %s249, 4
      %s251 = scalar_lea.vmem %s0, %s250
      %p252 = pneg %p41
      %p253 = pneg %p38
      %p254 = pneg %p62
      %p255 = pneg %p59
      %p256 = pneg %p83
      %p257 = pneg %p80
      %p258 = pneg %p104
      %p259 = pneg %p101
      %p260 = pneg %p125
      %p261 = pneg %p122
      %p262 = pneg %p146
      %p263 = pneg %p143
      %p264 = pneg %p172
      %p265 = pneg %p169
      %p266 = scmp.lt.s32.totalorder %s20, 1
      %s267 = scalar_select %p266, %s20, 1
      %s268 = smul.addr %s267, 2
      %s269 = smul.addr %s268, 8
      %s270 = scalar_lea.vmem %s6, %s269
      %p271 = pneg %p198
      %p272 = pneg %p195
      %p273 = scmp.lt.s32.totalorder %s20, 1
      %s274 = scalar_select %p273, %s20, 1
      %s275 = smul.addr %s274, 2
      %s276 = scalar_lea.vmem %s7, %s275
      %p277 = scmp.lt.s32.totalorder %s20, 1
      %s278 = scalar_select %p277, %s20, 1
      %s279 = smul.addr %s278, 2
      %s280 = smul.addr %s279, 4
      %s281 = scalar_lea.vmem %s0, %s280
      %p282 = scmp.lt.s32.totalorder %s20, 1
      %s283 = scalar_select %p282, %s20, 1
      %s284 = smul.addr %s283, 2
      %s285 = smul.addr %s284, 8
      %s286 = scalar_lea.vmem %s6, %s285
      %p287 = scmp.lt.s32.totalorder %s20, 1
      %s288 = scalar_select %p287, %s20, 1
      %s289 = smul.addr %s288, 2
      %s290 = scalar_lea.vmem %s7, %s289
      %291 = vst [vmem:[#allocation2] sm:$0xff] 0.0
      %vm292 = vcmask 138240
      %293 = vst.msk [vmem:[#allocation2 + $0x18] sm:$0xff] %vm292, 0.0
      %294 = vst [vmem:[#allocation2 + $0x8] sm:$0xf0] 0.0
      %295 = vst [vmem:[#allocation2 + $0x10] sm:$0xf0] 0.0
      %v296 = vld [vmem:[%s281] sm:$0xff]
      %v298 = vcombine.high %v296, %v296
      %300 = vst [vmem:[#allocation2 + $0x8] sm:$0xf] %v296
      %301 = vst [vmem:[#allocation2 + $0x10] sm:$0xf] %v298
      %v302 = vlaneseq
      %v303 = vand.u32 %v302, 127
      %v304 = vadd.s32 %v303, 128
      %vm305 = vcmp.lt.s32.totalorder %v303, 0
      %v306 = vsub.s32 0, %v303
      %v307 = vsel %vm305, %v306, %v303
      %v308 = vshrl.u32 %v307, 4
      %v309 = vand.u32 %v307, 15
      %v310 = vsub.s32 0, %v309
      %v311 = vsel %vm305, %v310, %v309
      %vm312 = vcmp.lt.s32.totalorder %v304, 0
      %v313 = vsub.s32 0, %v304
      %v314 = vsel %vm312, %v313, %v304
      %v315 = vshrl.u32 %v314, 4
      %v316 = vand.u32 %v314, 15
      %v317 = vsub.s32 0, %v316
      %v318 = vsel %vm312, %v317, %v316
      %vm319 = vcmp.ne.s32.totalorder %v311, 0
      %vm320 = vcmp.ne.s32.totalorder %v318, 0
      %vm321 = vcmp.lt.s32.totalorder %v311, 0
      %vm322 = vcmp.lt.s32.totalorder %v318, 0
      %vm323 = vmand %vm321, %vm319
      %vm324 = vmand %vm322, %vm320
      %v325 = vadd.s32 %v311, 16
      %v326 = vadd.s32 %v318, 16
      %v327 = vsel %vm323, %v325, %v311
      %v328 = vsel %vm324, %v326, %v318
      %v329 = vld [vmem:[#allocation2] sm:$0xff]
      %v330 = vld [vmem:[#allocation2 + $0x8] sm:$0xff]
      %v331 = vld [vmem:[#allocation2 + $0x10] sm:$0xff]
      %vm332 = vcmp.ge.s32.totalorder %v327, 1
      %vm333 = vcmp.ge.s32.totalorder %v328, 1
      %vm334 = vcmp.lt.s32.totalorder %v327, 16
      %vm335 = vcmp.lt.s32.totalorder %v328, 16
      %vm336 = vmand %vm332, %vm334
      %vm337 = vmand %vm333, %vm335
      %v338 = vsel %vm336, 1, 0
      %v339 = vsel %vm337, 1, 0
      %vm340 = vcmp.eq.s32.totalorder %v338, 1
      %vm341 = vcmp.eq.s32.totalorder %v339, 1
      %345 = vrot.lane.b32.xlu0 %v329, 17
      %v346 = vpop.permute.xlu0 %345
      %347 = vrot.lane.b32.xlu0 %v330, 17
      %v348 = vpop.permute.xlu0 %347
      %349 = vrot.lane.b32.xlu0 %v331, 17
      %v350 = vpop.permute.xlu0 %349
      %v351 = vsel %vm292, %v346, %v348
      %v352 = vsel %vm292, %v348, %v350
      %v355 = vsel %vm340, %v351, 0.0
      %v356 = vsel %vm341, %v352, 0.0
      %vm357 = vcmp.ge.s32.totalorder %v327, 0
      %vm358 = vcmp.ge.s32.totalorder %v328, 0
      %vm359 = vcmp.lt.s32.totalorder %v327, 15
      %vm360 = vcmp.lt.s32.totalorder %v328, 15
      %vm361 = vmand %vm357, %vm359
      %vm362 = vmand %vm358, %vm360
      %v363 = vsel %vm361, 1, 0
      %v364 = vsel %vm362, 1, 0
      %vm365 = vcmp.eq.s32.totalorder %v363, 1
      %vm366 = vcmp.eq.s32.totalorder %v364, 1
      %367 = vrot.lane.b32.xlu0 %v329, 15
      %v368 = vpop.permute.xlu0 %367
      %369 = vrot.lane.b32.xlu0 %v330, 15
      %v370 = vpop.permute.xlu0 %369
      %371 = vrot.lane.b32.xlu0 %v331, 15
      %v372 = vpop.permute.xlu0 %371
      %vm373 = vcmask 121856
      %v374 = vsel %vm373, %v368, %v370
      %v375 = vsel %vm373, %v370, %v372
      %v378 = vsel %vm365, %v374, 0.0
      %v379 = vsel %vm366, %v375, 0.0
      %380 = vrot.lane.b32.xlu0 %v329, 1
      %v381 = vpop.permute.xlu0 %380
      %382 = vrot.lane.b32.xlu0 %v330, 1
      %v383 = vpop.permute.xlu0 %382
      %384 = vrot.lane.b32.xlu0 %v331, 1
      %v385 = vpop.permute.xlu0 %384
      %vm386 = vcmask 7168
      %v387 = vsel %vm386, %v381, %v383
      %v388 = vsel %vm386, %v383, %v385
      %v391 = vsel %vm340, %v387, 0.0
      %v392 = vsel %vm341, %v388, 0.0
      %v393 = vld [vmem:[#allocation2 + $0x18] sm:$0xff]
      %395 = vrot.lane.b32.xlu0 %v330, 127
      %v396 = vpop.permute.xlu0 %395
      %397 = vrot.lane.b32.xlu0 %v331, 127
      %v398 = vpop.permute.xlu0 %397
      %399 = vrot.lane.b32.xlu0 %v393, 127
      %v400 = vpop.permute.xlu0 %399
      %vm401 = vcmask 1039360
      %v402 = vsel %vm401, %v396, %v398
      %v403 = vsel %vm401, %v398, %v400
      %v406 = vsel %vm365, %v402, 0.0
      %v407 = vsel %vm366, %v403, 0.0
      %408 = vrot.lane.b32.xlu0 %v330, 113
      %v409 = vpop.permute.xlu0 %408
      %410 = vrot.lane.b32.xlu0 %v331, 113
      %v411 = vpop.permute.xlu0 %410
      %412 = vrot.lane.b32.xlu0 %v393, 113
      %v413 = vpop.permute.xlu0 %412
      %vm414 = vcmask 924672
      %v415 = vsel %vm414, %v409, %v411
      %v416 = vsel %vm414, %v411, %v413
      %v419 = vsel %vm340, %v415, 0.0
      %v420 = vsel %vm341, %v416, 0.0
      %421 = vrot.lane.b32.xlu0 %v330, 111
      %v422 = vpop.permute.xlu0 %421
      %423 = vrot.lane.b32.xlu0 %v331, 111
      %v424 = vpop.permute.xlu0 %423
      %425 = vrot.lane.b32.xlu0 %v393, 111
      %v426 = vpop.permute.xlu0 %425
      %vm427 = vcmask 908288
      %v428 = vsel %vm427, %v422, %v424
      %v429 = vsel %vm427, %v424, %v426
      %v432 = vsel %vm365, %v428, 0.0
      %v433 = vsel %vm366, %v429, 0.0
      %434 = vrot.lane.b32.xlu0 %v329, 16
      %v435 = vpop.permute.xlu0 %434
      %436 = vrot.lane.b32.xlu0 %v330, 16
      %v437 = vpop.permute.xlu0 %436
      %438 = vrot.lane.b32.xlu0 %v331, 16
      %v439 = vpop.permute.xlu0 %438
      %vm440 = vcmask 130048
      %v441 = vsel %vm440, %v435, %v437
      %v442 = vsel %vm440, %v437, %v439
      %445 = vrot.lane.b32.xlu0 %v330, 112
      %v446 = vpop.permute.xlu0 %445
      %447 = vrot.lane.b32.xlu0 %v331, 112
      %v448 = vpop.permute.xlu0 %447
      %449 = vrot.lane.b32.xlu0 %v393, 112
      %v450 = vpop.permute.xlu0 %449
      %vm451 = vcmask 916480
      %v452 = vsel %vm451, %v446, %v448
      %v453 = vsel %vm451, %v448, %v450
      %v456 = vld [vmem:[%s1] sm:$0xff]
      %vm457 = vcmask 588800
      %v459 = vsel %vm457, %v456, 0
      %461 = vmatprep.subr.mxu0 0.0
      %462 = vmatpush1.msra.mxu0 0.0
      %463 = vmatprep.subr.mxu0 0.0
      %464 = vmatpush1.msra.mxu0 0.0
      %465 = vmatprep.subr.mxu0 0.0
      %466 = vmatpush1.msra.mxu0 0.0
      %467 = vmatprep.subr.mxu0 0.0
      %468 = vmatpush1.msra.mxu0 0.0
      %469 = vmatprep.subr.mxu0 0.0
      %470 = vmatpush1.msra.mxu0 0.0
      %471 = vmatprep.subr.mxu0 0.0
      %472 = vmatpush1.msra.mxu0 0.0
      %473 = vmatprep.subr.mxu0 0.0
      %474 = vmatpush1.msra.mxu0 0.0
      %475 = vmatprep.subr.mxu0 %v433
      %476 = vmatpush1.msra.mxu0 %v432
      %477 = vmatprep.subr.mxu0 %v453
      %478 = vmatpush1.msra.mxu0 %v452
      %479 = vmatprep.subr.mxu0 %v420
      %480 = vmatpush1.msra.mxu0 %v419
      %481 = vmatprep.subr.mxu0 %v407
      %482 = vmatpush1.msra.mxu0 %v406
      %483 = vmatprep.subr.mxu0 %v331
      %484 = vmatpush1.msra.mxu0 %v330
      %485 = vmatprep.subr.mxu0 %v392
      %486 = vmatpush1.msra.mxu0 %v391
      %487 = vmatprep.subr.mxu0 %v379
      %488 = vmatpush1.msra.mxu0 %v378
      %489 = vmatprep.subr.mxu0 %v442
      %490 = vmatpush1.msra.mxu0 %v441
      %491 = vmatprep.subr.mxu0 %v356
      %492 = vmatpush1.msra.mxu0 %v355
      %493 = vmatprep.subr.mxu0 0.0
      %494 = vmatpush2.msra.mxu0 0.0
      %495 = vmatprep.subr.mxu0 0.0
      %496 = vmatpush2.msra.mxu0 0.0
      %497 = vmatprep.subr.mxu0 0.0
      %498 = vmatpush2.msra.mxu0 0.0
      %499 = vmatprep.subr.mxu0 0.0
      %500 = vmatpush2.msra.mxu0 0.0
      %501 = vmatprep.subr.mxu0 0.0
      %502 = vmatpush2.msra.mxu0 0.0
      %503 = vmatprep.subr.mxu0 0.0
      %504 = vmatpush2.msra.mxu0 0.0
      %505 = vmatprep.subr.mxu0 0.0
      %506 = vmatpush2.msra.mxu0 0.0
      %507 = vmatprep.subr.mxu0 0.0
      %508 = vmatpush2.msra.mxu0 0.0
      %509 = vmatprep.subr.mxu0 0.0
      %510 = vmatpush2.msra.mxu0 0.0
      %511 = vmatprep.subr.mxu0 0.0
      %512 = vmatpush2.msra.mxu0 0.0
      %513 = vmatprep.subr.mxu0 0.0
      %514 = vmatpush2.msra.mxu0 0.0
      %515 = vmatprep.subr.mxu0 0.0
      %516 = vmatpush2.msra.mxu0 0.0
      %517 = vmatprep.subr.mxu0 0.0
      %518 = vmatpush2.msra.mxu0 0.0
      %519 = vmatprep.subr.mxu0 0.0
      %520 = vmatpush2.msra.mxu0 0.0
      %521 = vmatprep.subr.mxu0 0.0
      %522 = vmatpush2.msra.mxu0 0.0
      %523 = vmatprep.subr.mxu0 0.0
      %524 = vmatpush2.msra.mxu0 0.0
      %525 = vmatprep.mubr.f32.mxu0 0.0
      %526 = vmatmul.mubr.f32.gmra.mxu0 %v459
      %v527 = vpop.f32.mrf.mxu0
      %v528 = vadd.f32 0.0, %v527
      %v529 = vpop.f32.mrf.mxu0
      %v530 = vadd.f32 0.0, %v529
      %531 = vdwg.mxu0
      %v532 = vld [vmem:[%s2] sm:$0xff]
      %534 = vset.pattern.permute.xlu0 0
      %535 = vperm.xlu0 %534, %v532
      %v536 = vpop.permute.xlu0 %535
      %v538 = vmul.f32 %v528, %v536
      %v539 = vmul.f32 %v530, %v536
      %v540 = vld [vmem:[%s3] sm:$0xff]
      %542 = vset.pattern.permute.xlu0 0
      %543 = vperm.xlu0 %542, %v540
      %v544 = vpop.permute.xlu0 %543
      %v546 = vadd.f32 %v538, %v544
      %v547 = vadd.f32 %v539, %v544
      %v548 = vmax.f32 %v546, 0.0
      %v549 = vmax.f32 %v547, 0.0
      %550 = vst [vmem:[%s286] sm:$0xff] %v548
      %551 = vst [vmem:[%s286 + $0x8] sm:$0xff] %v549
      %v552 = vrot.slane %v548, 4
      %v553 = vadd.f32 %v548, %v552
      %v554 = vrot.slane %v553, 2
      %v555 = vadd.f32 %v553, %v554
      %v556 = vrot.slane %v555, 1
      %v557 = vadd.f32 %v555, %v556
      %v558 = vrot.slane %v549, 4
      %v559 = vadd.f32 %v549, %v558
      %v560 = vrot.slane %v559, 2
      %v561 = vadd.f32 %v559, %v560
      %v562 = vrot.slane %v561, 1
      %v563 = vadd.f32 %v561, %v562
      %v564 = vrot.slane %v548, 4
      %v565 = vmax.f32 %v548, %v564
      %v566 = vrot.slane %v565, 2
      %v567 = vmax.f32 %v565, %v566
      %v568 = vrot.slane %v567, 1
      %v569 = vmax.f32 %v567, %v568
      %v570 = vrot.slane %v549, 4
      %v571 = vmax.f32 %v549, %v570
      %v572 = vrot.slane %v571, 2
      %v573 = vmax.f32 %v571, %v572
      %v574 = vrot.slane %v573, 1
      %v575 = vmax.f32 %v573, %v574
      %576 = vst [vmem:[#allocation3] sm:$0x3] 0.0
      %vm577 = vcmask 410624
      %578 = vst.msk [vmem:[#allocation3 + $0x6] sm:$0x3] %vm577, 0.0
      %v581 = vcombine.low %v557, %v563
      %v583 = vunpack.c.l.s4 1966171168
      %v584 = vunpack.c.0.s8 %v583
      %v585 = vlaneseq
      %v586 = vshrl.u32 %v585, 7
      %v587 = vsub.s32 %v584, %v586
      %v588 = vrot.slane %v581, %v587
      %v590 = vunpack.c.l.s4 1966171168
      %v591 = vunpack.c.0.s8 %v590
      %v592 = vlaneseq
      %v593 = vshrl.u32 %v592, 7
      %v594 = vsub.s32 %v591, %v593
      %v595 = vrot.slane %v588, %v594
      %v597 = vlaneseq
      %vm598 = vcmp.ge.s32.totalorder %v597, 0
      %vm599 = vcmp.lt.s32.totalorder %v597, 256
      %vm600 = vmand %vm598, %vm599
      %s601 = scalar_lea.vmem [#allocation3], 2
      %602 = vst.msk [vmem:[%s601] ss:$2 sm:$0x3] %vm600, %v595
      %v605 = vcombine.low %v569, %v575
      %v607 = vunpack.c.l.s4 1966171168
      %v608 = vunpack.c.0.s8 %v607
      %v609 = vlaneseq
      %v610 = vshrl.u32 %v609, 7
      %v611 = vsub.s32 %v608, %v610
      %v612 = vrot.slane %v605, %v611
      %v614 = vunpack.c.l.s4 1966171168
      %v615 = vunpack.c.0.s8 %v614
      %v616 = vlaneseq
      %v617 = vshrl.u32 %v616, 7
      %v618 = vsub.s32 %v615, %v617
      %v619 = vrot.slane %v612, %v618
      %s621 = scalar_lea.vmem [#allocation3], 3
      %622 = vst.msk [vmem:[%s621] ss:$2 sm:$0x3] %vm600, %v619
      %v623 = vld [vmem:[%s4] sm:$0x3]
      %v624 = vld [vmem:[#allocation3] sm:$0x3f]
      %626 = vset.pattern.permute.xlu0 0
      %627 = vperm.xlu0 %626, %v623
      %v628 = vpop.permute.xlu0 %627
      %v630 = vunpack.c.l.s4 269488144
      %v631 = vunpack.c.0.s8 %v630
      %v632 = vlaneseq
      %v633 = vshrl.u32 %v632, 7
      %v634 = vsub.s32 %v631, %v633
      %v635 = vrot.slane %v628, %v634
      %v637 = vmul.f32 %v624, %v635
      %v638 = vadd.f32 %v637, 0.0
      %639 = vset.pattern.permute.xlu0 7
      %640 = vperm.xlu0 %639, %v623
      %v641 = vpop.permute.xlu0 %640
      %v643 = vunpack.c.l.s4 269488144
      %v644 = vunpack.c.0.s8 %v643
      %v645 = vlaneseq
      %v646 = vshrl.u32 %v645, 7
      %v647 = vsub.s32 %v644, %v646
      %v648 = vrot.slane %v641, %v647
      %v650 = vmul.f32 %v624, %v648
      %652 = vrot.lane.b32.xlu0 %v650, 112
      %v653 = vpop.permute.xlu0 %652
      %v654 = vrot.slane %v653, 2
      %v655 = vsel %vm451, %v653, %v654
      %v657 = vadd.f32 %v638, %v655
      %658 = vset.pattern.permute.xlu0 14
      %659 = vperm.xlu0 %658, %v623
      %v660 = vpop.permute.xlu0 %659
      %v662 = vunpack.c.l.s4 269488144
      %v663 = vunpack.c.0.s8 %v662
      %v664 = vlaneseq
      %v665 = vshrl.u32 %v664, 7
      %v666 = vsub.s32 %v663, %v665
      %v667 = vrot.slane %v660, %v666
      %v669 = vmul.f32 %v624, %v667
      %671 = vrot.lane.b32.xlu0 %v669, 96
      %v672 = vpop.permute.xlu0 %671
      %v673 = vrot.slane %v672, 2
      %vm674 = vcmask 785408
      %v675 = vsel %vm674, %v672, %v673
      %v677 = vadd.f32 %v657, %v675
      %678 = vset.pattern.permute.xlu0 21
      %679 = vperm.xlu0 %678, %v623
      %v680 = vpop.permute.xlu0 %679
      %v682 = vunpack.c.l.s4 269488144
      %v683 = vunpack.c.0.s8 %v682
      %v684 = vlaneseq
      %v685 = vshrl.u32 %v684, 7
      %v686 = vsub.s32 %v683, %v685
      %v687 = vrot.slane %v680, %v686
      %v689 = vmul.f32 %v624, %v687
      %691 = vrot.lane.b32.xlu0 %v689, 80
      %v692 = vpop.permute.xlu0 %691
      %v693 = vrot.slane %v692, 2
      %vm694 = vcmask 654336
      %v695 = vsel %vm694, %v692, %v693
      %v697 = vadd.f32 %v677, %v695
      %v698 = vld [vmem:[#allocation3 + $0x2] sm:$0x3f]
      %699 = vset.pattern.permute.xlu0 28
      %700 = vperm.xlu0 %699, %v623
      %v701 = vpop.permute.xlu0 %700
      %v703 = vunpack.c.l.s4 269488144
      %v704 = vunpack.c.0.s8 %v703
      %v705 = vlaneseq
      %v706 = vshrl.u32 %v705, 7
      %v707 = vsub.s32 %v704, %v706
      %v708 = vrot.slane %v701, %v707
      %v710 = vmul.f32 %v698, %v708
      %712 = vrot.lane.b32.xlu0 %v710, 64
      %v713 = vpop.permute.xlu0 %712
      %v714 = vrot.slane %v713, 6
      %vm715 = vcmask 523264
      %v716 = vsel %vm715, %v714, %v713
      %v718 = vadd.f32 %v697, %v716
      %719 = vset.pattern.permute.xlu0 35
      %720 = vperm.xlu0 %719, %v623
      %v721 = vpop.permute.xlu0 %720
      %v723 = vunpack.c.l.s4 269488144
      %v724 = vunpack.c.0.s8 %v723
      %v725 = vlaneseq
      %v726 = vshrl.u32 %v725, 7
      %v727 = vsub.s32 %v724, %v726
      %v728 = vrot.slane %v721, %v727
      %v730 = vmul.f32 %v698, %v728
      %732 = vrot.lane.b32.xlu0 %v730, 48
      %v733 = vpop.permute.xlu0 %732
      %v734 = vrot.slane %v733, 6
      %vm735 = vcmask 392192
      %v736 = vsel %vm735, %v734, %v733
      %v738 = vadd.f32 %v718, %v736
      %739 = vset.pattern.permute.xlu0 42
      %740 = vperm.xlu0 %739, %v623
      %v741 = vpop.permute.xlu0 %740
      %v743 = vunpack.c.l.s4 269488144
      %v744 = vunpack.c.0.s8 %v743
      %v745 = vlaneseq
      %v746 = vshrl.u32 %v745, 7
      %v747 = vsub.s32 %v744, %v746
      %v748 = vrot.slane %v741, %v747
      %v750 = vmul.f32 %v698, %v748
      %752 = vrot.lane.b32.xlu0 %v750, 32
      %v753 = vpop.permute.xlu0 %752
      %v754 = vrot.slane %v753, 6
      %vm755 = vcmask 261120
      %v756 = vsel %vm755, %v754, %v753
      %v758 = vadd.f32 %v738, %v756
      %vm759 = vcmp.ge.s32.totalorder %v327, 3
      %vm760 = vcmp.ge.s32.totalorder %v328, 3
      %vm761 = vmand %vm759, %vm334
      %vm762 = vmand %vm760, %vm335
      %v763 = vsel %vm761, 1, 0
      %v764 = vsel %vm762, 1, 0
      %vm765 = vcmp.eq.s32.totalorder %v763, 1
      %vm766 = vcmp.eq.s32.totalorder %v764, 1
      %v768 = vcombine.high %v758, %v758
      %v770 = vunpack.c.l.s4 1983009808
      %v771 = vunpack.c.0.s8 %v770
      %v772 = vlaneseq
      %v773 = vshrl.u32 %v772, 7
      %v774 = vsub.s32 %v771, %v773
      %v775 = vrot.slane %v758, %v774
      %v777 = vunpack.c.l.s4 1983009808
      %v778 = vunpack.c.0.s8 %v777
      %v779 = vlaneseq
      %v780 = vshrl.u32 %v779, 7
      %v781 = vsub.s32 %v778, %v780
      %v782 = vrot.slane %v768, %v781
      %v783 = vcombine.high %v775, %v775
      %784 = vrot.lane.b32.xlu0 %v775, 51
      %v785 = vpop.permute.xlu0 %784
      %786 = vrot.lane.b32.xlu0 %v783, 51
      %v787 = vpop.permute.xlu0 %786
      %788 = vrot.lane.b32.xlu0 %v782, 51
      %v789 = vpop.permute.xlu0 %788
      %vm790 = vcmask 416768
      %v791 = vsel %vm790, %v785, %v787
      %v792 = vsel %vm790, %v787, %v789
      %v795 = vsel %vm765, %v791, 0.0
      %v796 = vsel %vm766, %v792, 0.0
      %v797 = vadd.f32 %v795, 0.0
      %v798 = vadd.f32 %v796, 0.0
      %v799 = vld [vmem:[#allocation3] sm:$0x3f]
      %800 = vset.pattern.permute.xlu0 1
      %801 = vperm.xlu0 %800, %v623
      %v802 = vpop.permute.xlu0 %801
      %v804 = vunpack.c.l.s4 269488144
      %v805 = vunpack.c.0.s8 %v804
      %v806 = vlaneseq
      %v807 = vshrl.u32 %v806, 7
      %v808 = vsub.s32 %v805, %v807
      %v809 = vrot.slane %v802, %v808
      %v811 = vmul.f32 %v799, %v809
      %v812 = vadd.f32 %v811, 0.0
      %813 = vset.pattern.permute.xlu0 8
      %814 = vperm.xlu0 %813, %v623
      %v815 = vpop.permute.xlu0 %814
      %v817 = vunpack.c.l.s4 269488144
      %v818 = vunpack.c.0.s8 %v817
      %v819 = vlaneseq
      %v820 = vshrl.u32 %v819, 7
      %v821 = vsub.s32 %v818, %v820
      %v822 = vrot.slane %v815, %v821
      %v824 = vmul.f32 %v799, %v822
      %826 = vrot.lane.b32.xlu0 %v824, 112
      %v827 = vpop.permute.xlu0 %826
      %v828 = vrot.slane %v827, 2
      %v829 = vsel %vm451, %v827, %v828
      %v831 = vadd.f32 %v812, %v829
      %832 = vset.pattern.permute.xlu0 15
      %833 = vperm.xlu0 %832, %v623
      %v834 = vpop.permute.xlu0 %833
      %v836 = vunpack.c.l.s4 269488144
      %v837 = vunpack.c.0.s8 %v836
      %v838 = vlaneseq
      %v839 = vshrl.u32 %v838, 7
      %v840 = vsub.s32 %v837, %v839
      %v841 = vrot.slane %v834, %v840
      %v843 = vmul.f32 %v799, %v841
      %845 = vrot.lane.b32.xlu0 %v843, 96
      %v846 = vpop.permute.xlu0 %845
      %v847 = vrot.slane %v846, 2
      %v848 = vsel %vm674, %v846, %v847
      %v850 = vadd.f32 %v831, %v848
      %851 = vset.pattern.permute.xlu0 22
      %852 = vperm.xlu0 %851, %v623
      %v853 = vpop.permute.xlu0 %852
      %v855 = vunpack.c.l.s4 269488144
      %v856 = vunpack.c.0.s8 %v855
      %v857 = vlaneseq
      %v858 = vshrl.u32 %v857, 7
      %v859 = vsub.s32 %v856, %v858
      %v860 = vrot.slane %v853, %v859
      %v862 = vmul.f32 %v799, %v860
      %864 = vrot.lane.b32.xlu0 %v862, 80
      %v865 = vpop.permute.xlu0 %864
      %v866 = vrot.slane %v865, 2
      %v867 = vsel %vm694, %v865, %v866
      %v869 = vadd.f32 %v850, %v867
      %v870 = vld [vmem:[#allocation3 + $0x2] sm:$0x3f]
      %871 = vset.pattern.permute.xlu0 29
      %872 = vperm.xlu0 %871, %v623
      %v873 = vpop.permute.xlu0 %872
      %v875 = vunpack.c.l.s4 269488144
      %v876 = vunpack.c.0.s8 %v875
      %v877 = vlaneseq
      %v878 = vshrl.u32 %v877, 7
      %v879 = vsub.s32 %v876, %v878
      %v880 = vrot.slane %v873, %v879
      %v882 = vmul.f32 %v870, %v880
      %884 = vrot.lane.b32.xlu0 %v882, 64
      %v885 = vpop.permute.xlu0 %884
      %v886 = vrot.slane %v885, 6
      %v887 = vsel %vm715, %v886, %v885
      %v889 = vadd.f32 %v869, %v887
      %890 = vset.pattern.permute.xlu0 36
      %891 = vperm.xlu0 %890, %v623
      %v892 = vpop.permute.xlu0 %891
      %v894 = vunpack.c.l.s4 269488144
      %v895 = vunpack.c.0.s8 %v894
      %v896 = vlaneseq
      %v897 = vshrl.u32 %v896, 7
      %v898 = vsub.s32 %v895, %v897
      %v899 = vrot.slane %v892, %v898
      %v901 = vmul.f32 %v870, %v899
      %903 = vrot.lane.b32.xlu0 %v901, 48
      %v904 = vpop.permute.xlu0 %903
      %v905 = vrot.slane %v904, 6
      %v906 = vsel %vm735, %v905, %v904
      %v908 = vadd.f32 %v889, %v906
      %909 = vset.pattern.permute.xlu0 43
      %910 = vperm.xlu0 %909, %v623
      %v911 = vpop.permute.xlu0 %910
      %v913 = vunpack.c.l.s4 269488144
      %v914 = vunpack.c.0.s8 %v913
      %v915 = vlaneseq
      %v916 = vshrl.u32 %v915, 7
      %v917 = vsub.s32 %v914, %v916
      %v918 = vrot.slane %v911, %v917
      %v920 = vmul.f32 %v870, %v918
      %922 = vrot.lane.b32.xlu0 %v920, 32
      %v923 = vpop.permute.xlu0 %922
      %v924 = vrot.slane %v923, 6
      %v925 = vsel %vm755, %v924, %v923
      %v927 = vadd.f32 %v908, %v925
      %vm928 = vcmp.ge.s32.totalorder %v327, 2
      %vm929 = vcmp.ge.s32.totalorder %v328, 2
      %vm930 = vmand %vm928, %vm334
      %vm931 = vmand %vm929, %vm335
      %v932 = vsel %vm930, 1, 0
      %v933 = vsel %vm931, 1, 0
      %vm934 = vcmp.eq.s32.totalorder %v932, 1
      %vm935 = vcmp.eq.s32.totalorder %v933, 1
      %v937 = vcombine.high %v927, %v927
      %v939 = vunpack.c.l.s4 1983009808
      %v940 = vunpack.c.0.s8 %v939
      %v941 = vlaneseq
      %v942 = vshrl.u32 %v941, 7
      %v943 = vsub.s32 %v940, %v942
      %v944 = vrot.slane %v927, %v943
      %v946 = vunpack.c.l.s4 1983009808
      %v947 = vunpack.c.0.s8 %v946
      %v948 = vlaneseq
      %v949 = vshrl.u32 %v948, 7
      %v950 = vsub.s32 %v947, %v949
      %v951 = vrot.slane %v937, %v950
      %v952 = vcombine.high %v944, %v944
      %953 = vrot.lane.b32.xlu0 %v944, 50
      %v954 = vpop.permute.xlu0 %953
      %955 = vrot.lane.b32.xlu0 %v952, 50
      %v956 = vpop.permute.xlu0 %955
      %957 = vrot.lane.b32.xlu0 %v951, 50
      %v958 = vpop.permute.xlu0 %957
      %vm959 = vcmask 408576
      %v960 = vsel %vm959, %v954, %v956
      %v961 = vsel %vm959, %v956, %v958
      %v964 = vsel %vm934, %v960, 0.0
      %v965 = vsel %vm935, %v961, 0.0
      %v966 = vadd.f32 %v797, %v964
      %v967 = vadd.f32 %v798, %v965
      %v968 = vld [vmem:[#allocation3] sm:$0x3f]
      %969 = vset.pattern.permute.xlu0 2
      %970 = vperm.xlu0 %969, %v623
      %v971 = vpop.permute.xlu0 %970
      %v973 = vunpack.c.l.s4 269488144
      %v974 = vunpack.c.0.s8 %v973
      %v975 = vlaneseq
      %v976 = vshrl.u32 %v975, 7
      %v977 = vsub.s32 %v974, %v976
      %v978 = vrot.slane %v971, %v977
      %v980 = vmul.f32 %v968, %v978
      %v981 = vadd.f32 %v980, 0.0
      %982 = vset.pattern.permute.xlu0 9
      %983 = vperm.xlu0 %982, %v623
      %v984 = vpop.permute.xlu0 %983
      %v986 = vunpack.c.l.s4 269488144
      %v987 = vunpack.c.0.s8 %v986
      %v988 = vlaneseq
      %v989 = vshrl.u32 %v988, 7
      %v990 = vsub.s32 %v987, %v989
      %v991 = vrot.slane %v984, %v990
      %v993 = vmul.f32 %v968, %v991
      %995 = vrot.lane.b32.xlu0 %v993, 112
      %v996 = vpop.permute.xlu0 %995
      %v997 = vrot.slane %v996, 2
      %v998 = vsel %vm451, %v996, %v997
      %v1000 = vadd.f32 %v981, %v998
      %1001 = vset.pattern.permute.xlu0 16
      %1002 = vperm.xlu0 %1001, %v623
      %v1003 = vpop.permute.xlu0 %1002
      %v1005 = vunpack.c.l.s4 269488144
      %v1006 = vunpack.c.0.s8 %v1005
      %v1007 = vlaneseq
      %v1008 = vshrl.u32 %v1007, 7
      %v1009 = vsub.s32 %v1006, %v1008
      %v1010 = vrot.slane %v1003, %v1009
      %v1012 = vmul.f32 %v968, %v1010
      %1014 = vrot.lane.b32.xlu0 %v1012, 96
      %v1015 = vpop.permute.xlu0 %1014
      %v1016 = vrot.slane %v1015, 2
      %v1017 = vsel %vm674, %v1015, %v1016
      %v1019 = vadd.f32 %v1000, %v1017
      %1020 = vset.pattern.permute.xlu0 23
      %1021 = vperm.xlu0 %1020, %v623
      %v1022 = vpop.permute.xlu0 %1021
      %v1024 = vunpack.c.l.s4 269488144
      %v1025 = vunpack.c.0.s8 %v1024
      %v1026 = vlaneseq
      %v1027 = vshrl.u32 %v1026, 7
      %v1028 = vsub.s32 %v1025, %v1027
      %v1029 = vrot.slane %v1022, %v1028
      %v1031 = vmul.f32 %v968, %v1029
      %1033 = vrot.lane.b32.xlu0 %v1031, 80
      %v1034 = vpop.permute.xlu0 %1033
      %v1035 = vrot.slane %v1034, 2
      %v1036 = vsel %vm694, %v1034, %v1035
      %v1038 = vadd.f32 %v1019, %v1036
      %v1039 = vld [vmem:[#allocation3 + $0x2] sm:$0x3f]
      %1040 = vset.pattern.permute.xlu0 30
      %1041 = vperm.xlu0 %1040, %v623
      %v1042 = vpop.permute.xlu0 %1041
      %v1044 = vunpack.c.l.s4 269488144
      %v1045 = vunpack.c.0.s8 %v1044
      %v1046 = vlaneseq
      %v1047 = vshrl.u32 %v1046, 7
      %v1048 = vsub.s32 %v1045, %v1047
      %v1049 = vrot.slane %v1042, %v1048
      %v1051 = vmul.f32 %v1039, %v1049
      %1053 = vrot.lane.b32.xlu0 %v1051, 64
      %v1054 = vpop.permute.xlu0 %1053
      %v1055 = vrot.slane %v1054, 6
      %v1056 = vsel %vm715, %v1055, %v1054
      %v1058 = vadd.f32 %v1038, %v1056
      %1059 = vset.pattern.permute.xlu0 37
      %1060 = vperm.xlu0 %1059, %v623
      %v1061 = vpop.permute.xlu0 %1060
      %v1063 = vunpack.c.l.s4 269488144
      %v1064 = vunpack.c.0.s8 %v1063
      %v1065 = vlaneseq
      %v1066 = vshrl.u32 %v1065, 7
      %v1067 = vsub.s32 %v1064, %v1066
      %v1068 = vrot.slane %v1061, %v1067
      %v1070 = vmul.f32 %v1039, %v1068
      %1072 = vrot.lane.b32.xlu0 %v1070, 48
      %v1073 = vpop.permute.xlu0 %1072
      %v1074 = vrot.slane %v1073, 6
      %v1075 = vsel %vm735, %v1074, %v1073
      %v1077 = vadd.f32 %v1058, %v1075
      %1078 = vset.pattern.permute.xlu0 44
      %1079 = vperm.xlu0 %1078, %v623
      %v1080 = vpop.permute.xlu0 %1079
      %v1082 = vunpack.c.l.s4 269488144
      %v1083 = vunpack.c.0.s8 %v1082
      %v1084 = vlaneseq
      %v1085 = vshrl.u32 %v1084, 7
      %v1086 = vsub.s32 %v1083, %v1085
      %v1087 = vrot.slane %v1080, %v1086
      %v1089 = vmul.f32 %v1039, %v1087
      %1091 = vrot.lane.b32.xlu0 %v1089, 32
      %v1092 = vpop.permute.xlu0 %1091
      %v1093 = vrot.slane %v1092, 6
      %v1094 = vsel %vm755, %v1093, %v1092
      %v1096 = vadd.f32 %v1077, %v1094
      %v1098 = vcombine.high %v1096, %v1096
      %v1100 = vunpack.c.l.s4 1983009808
      %v1101 = vunpack.c.0.s8 %v1100
      %v1102 = vlaneseq
      %v1103 = vshrl.u32 %v1102, 7
      %v1104 = vsub.s32 %v1101, %v1103
      %v1105 = vrot.slane %v1096, %v1104
      %v1107 = vunpack.c.l.s4 1983009808
      %v1108 = vunpack.c.0.s8 %v1107
      %v1109 = vlaneseq
      %v1110 = vshrl.u32 %v1109, 7
      %v1111 = vsub.s32 %v1108, %v1110
      %v1112 = vrot.slane %v1098, %v1111
      %v1113 = vcombine.high %v1105, %v1105
      %1114 = vrot.lane.b32.xlu0 %v1105, 49
      %v1115 = vpop.permute.xlu0 %1114
      %1116 = vrot.lane.b32.xlu0 %v1113, 49
      %v1117 = vpop.permute.xlu0 %1116
      %1118 = vrot.lane.b32.xlu0 %v1112, 49
      %v1119 = vpop.permute.xlu0 %1118
      %vm1120 = vcmask 400384
      %v1121 = vsel %vm1120, %v1115, %v1117
      %v1122 = vsel %vm1120, %v1117, %v1119
      %v1125 = vsel %vm340, %v1121, 0.0
      %v1126 = vsel %vm341, %v1122, 0.0
      %v1127 = vadd.f32 %v966, %v1125
      %v1128 = vadd.f32 %v967, %v1126
      %v1129 = vld [vmem:[#allocation3] sm:$0x3f]
      %1130 = vset.pattern.permute.xlu0 3
      %1131 = vperm.xlu0 %1130, %v623
      %v1132 = vpop.permute.xlu0 %1131
      %v1134 = vunpack.c.l.s4 269488144
      %v1135 = vunpack.c.0.s8 %v1134
      %v1136 = vlaneseq
      %v1137 = vshrl.u32 %v1136, 7
      %v1138 = vsub.s32 %v1135, %v1137
      %v1139 = vrot.slane %v1132, %v1138
      %v1141 = vmul.f32 %v1129, %v1139
      %v1142 = vadd.f32 %v1141, 0.0
      %1143 = vset.pattern.permute.xlu0 10
      %1144 = vperm.xlu0 %1143, %v623
      %v1145 = vpop.permute.xlu0 %1144
      %v1147 = vunpack.c.l.s4 269488144
      %v1148 = vunpack.c.0.s8 %v1147
      %v1149 = vlaneseq
      %v1150 = vshrl.u32 %v1149, 7
      %v1151 = vsub.s32 %v1148, %v1150
      %v1152 = vrot.slane %v1145, %v1151
      %v1154 = vmul.f32 %v1129, %v1152
      %1156 = vrot.lane.b32.xlu0 %v1154, 112
      %v1157 = vpop.permute.xlu0 %1156
      %v1158 = vrot.slane %v1157, 2
      %v1159 = vsel %vm451, %v1157, %v1158
      %v1161 = vadd.f32 %v1142, %v1159
      %1162 = vset.pattern.permute.xlu0 17
      %1163 = vperm.xlu0 %1162, %v623
      %v1164 = vpop.permute.xlu0 %1163
      %v1166 = vunpack.c.l.s4 269488144
      %v1167 = vunpack.c.0.s8 %v1166
      %v1168 = vlaneseq
      %v1169 = vshrl.u32 %v1168, 7
      %v1170 = vsub.s32 %v1167, %v1169
      %v1171 = vrot.slane %v1164, %v1170
      %v1173 = vmul.f32 %v1129, %v1171
      %1175 = vrot.lane.b32.xlu0 %v1173, 96
      %v1176 = vpop.permute.xlu0 %1175
      %v1177 = vrot.slane %v1176, 2
      %v1178 = vsel %vm674, %v1176, %v1177
      %v1180 = vadd.f32 %v1161, %v1178
      %v1181 = vld [vmem:[#allocation3 + $0x2] sm:$0xf]
      %1182 = vset.pattern.permute.xlu0 24
      %1183 = vperm.xlu0 %1182, %v623
      %v1184 = vpop.permute.xlu0 %1183
      %v1186 = vunpack.c.l.s4 269488144
      %v1187 = vunpack.c.0.s8 %v1186
      %v1188 = vlaneseq
      %v1189 = vshrl.u32 %v1188, 7
      %v1190 = vsub.s32 %v1187, %v1189
      %v1191 = vrot.slane %v1184, %v1190
      %v1193 = vmul.f32 %v1181, %v1191
      %1195 = vrot.lane.b32.xlu0 %v1193, 80
      %v1196 = vpop.permute.xlu0 %1195
      %v1197 = vrot.slane %v1196, 6
      %v1198 = vsel %vm694, %v1197, %v1196
      %v1200 = vadd.f32 %v1180, %v1198
      %v1201 = vld [vmem:[#allocation3 + $0x2] sm:$0x3f]
      %1202 = vset.pattern.permute.xlu0 31
      %1203 = vperm.xlu0 %1202, %v623
      %v1204 = vpop.permute.xlu0 %1203
      %v1206 = vunpack.c.l.s4 269488144
      %v1207 = vunpack.c.0.s8 %v1206
      %v1208 = vlaneseq
      %v1209 = vshrl.u32 %v1208, 7
      %v1210 = vsub.s32 %v1207, %v1209
      %v1211 = vrot.slane %v1204, %v1210
      %v1213 = vmul.f32 %v1201, %v1211
      %1215 = vrot.lane.b32.xlu0 %v1213, 64
      %v1216 = vpop.permute.xlu0 %1215
      %v1217 = vrot.slane %v1216, 6
      %v1218 = vsel %vm715, %v1217, %v1216
      %v1220 = vadd.f32 %v1200, %v1218
      %1221 = vset.pattern.permute.xlu0 38
      %1222 = vperm.xlu0 %1221, %v623
      %v1223 = vpop.permute.xlu0 %1222
      %v1225 = vunpack.c.l.s4 269488144
      %v1226 = vunpack.c.0.s8 %v1225
      %v1227 = vlaneseq
      %v1228 = vshrl.u32 %v1227, 7
      %v1229 = vsub.s32 %v1226, %v1228
      %v1230 = vrot.slane %v1223, %v1229
      %v1232 = vmul.f32 %v1201, %v1230
      %1234 = vrot.lane.b32.xlu0 %v1232, 48
      %v1235 = vpop.permute.xlu0 %1234
      %v1236 = vrot.slane %v1235, 6
      %v1237 = vsel %vm735, %v1236, %v1235
      %v1239 = vadd.f32 %v1220, %v1237
      %1240 = vset.pattern.permute.xlu0 45
      %1241 = vperm.xlu0 %1240, %v623
      %v1242 = vpop.permute.xlu0 %1241
      %v1244 = vunpack.c.l.s4 269488144
      %v1245 = vunpack.c.0.s8 %v1244
      %v1246 = vlaneseq
      %v1247 = vshrl.u32 %v1246, 7
      %v1248 = vsub.s32 %v1245, %v1247
      %v1249 = vrot.slane %v1242, %v1248
      %v1251 = vmul.f32 %v1201, %v1249
      %1253 = vrot.lane.b32.xlu0 %v1251, 32
      %v1254 = vpop.permute.xlu0 %1253
      %v1255 = vrot.slane %v1254, 6
      %v1256 = vsel %vm755, %v1255, %v1254
      %v1258 = vadd.f32 %v1239, %v1256
      %v1260 = vcombine.high %v1258, %v1258
      %v1262 = vunpack.c.l.s4 1983009808
      %v1263 = vunpack.c.0.s8 %v1262
      %v1264 = vlaneseq
      %v1265 = vshrl.u32 %v1264, 7
      %v1266 = vsub.s32 %v1263, %v1265
      %v1267 = vrot.slane %v1258, %v1266
      %v1269 = vunpack.c.l.s4 1983009808
      %v1270 = vunpack.c.0.s8 %v1269
      %v1271 = vlaneseq
      %v1272 = vshrl.u32 %v1271, 7
      %v1273 = vsub.s32 %v1270, %v1272
      %v1274 = vrot.slane %v1260, %v1273
      %v1275 = vcombine.high %v1267, %v1267
      %1276 = vrot.lane.b32.xlu0 %v1267, 48
      %v1277 = vpop.permute.xlu0 %1276
      %1278 = vrot.lane.b32.xlu0 %v1275, 48
      %v1279 = vpop.permute.xlu0 %1278
      %1280 = vrot.lane.b32.xlu0 %v1274, 48
      %v1281 = vpop.permute.xlu0 %1280
      %v1282 = vsel %vm735, %v1277, %v1279
      %v1283 = vsel %vm735, %v1279, %v1281
      %v1286 = vadd.f32 %v1127, %v1282
      %v1287 = vadd.f32 %v1128, %v1283
      %v1288 = vld [vmem:[#allocation3] sm:$0x3f]
      %1289 = vset.pattern.permute.xlu0 4
      %1290 = vperm.xlu0 %1289, %v623
      %v1291 = vpop.permute.xlu0 %1290
      %v1293 = vunpack.c.l.s4 269488144
      %v1294 = vunpack.c.0.s8 %v1293
      %v1295 = vlaneseq
      %v1296 = vshrl.u32 %v1295, 7
      %v1297 = vsub.s32 %v1294, %v1296
      %v1298 = vrot.slane %v1291, %v1297
      %v1300 = vmul.f32 %v1288, %v1298
      %v1301 = vadd.f32 %v1300, 0.0
      %1302 = vset.pattern.permute.xlu0 11
      %1303 = vperm.xlu0 %1302, %v623
      %v1304 = vpop.permute.xlu0 %1303
      %v1306 = vunpack.c.l.s4 269488144
      %v1307 = vunpack.c.0.s8 %v1306
      %v1308 = vlaneseq
      %v1309 = vshrl.u32 %v1308, 7
      %v1310 = vsub.s32 %v1307, %v1309
      %v1311 = vrot.slane %v1304, %v1310
      %v1313 = vmul.f32 %v1288, %v1311
      %1315 = vrot.lane.b32.xlu0 %v1313, 112
      %v1316 = vpop.permute.xlu0 %1315
      %v1317 = vrot.slane %v1316, 2
      %v1318 = vsel %vm451, %v1316, %v1317
      %v1320 = vadd.f32 %v1301, %v1318
      %1321 = vset.pattern.permute.xlu0 18
      %1322 = vperm.xlu0 %1321, %v623
      %v1323 = vpop.permute.xlu0 %1322
      %v1325 = vunpack.c.l.s4 269488144
      %v1326 = vunpack.c.0.s8 %v1325
      %v1327 = vlaneseq
      %v1328 = vshrl.u32 %v1327, 7
      %v1329 = vsub.s32 %v1326, %v1328
      %v1330 = vrot.slane %v1323, %v1329
      %v1332 = vmul.f32 %v1288, %v1330
      %1334 = vrot.lane.b32.xlu0 %v1332, 96
      %v1335 = vpop.permute.xlu0 %1334
      %v1336 = vrot.slane %v1335, 2
      %v1337 = vsel %vm674, %v1335, %v1336
      %v1339 = vadd.f32 %v1320, %v1337
      %v1340 = vld [vmem:[#allocation3 + $0x2] sm:$0x3f]
      %1341 = vset.pattern.permute.xlu0 25
      %1342 = vperm.xlu0 %1341, %v623
      %v1343 = vpop.permute.xlu0 %1342
      %v1345 = vunpack.c.l.s4 269488144
      %v1346 = vunpack.c.0.s8 %v1345
      %v1347 = vlaneseq
      %v1348 = vshrl.u32 %v1347, 7
      %v1349 = vsub.s32 %v1346, %v1348
      %v1350 = vrot.slane %v1343, %v1349
      %v1352 = vmul.f32 %v1340, %v1350
      %1354 = vrot.lane.b32.xlu0 %v1352, 80
      %v1355 = vpop.permute.xlu0 %1354
      %v1356 = vrot.slane %v1355, 6
      %v1357 = vsel %vm694, %v1356, %v1355
      %v1359 = vadd.f32 %v1339, %v1357
      %1360 = vset.pattern.permute.xlu0 32
      %1361 = vperm.xlu0 %1360, %v623
      %v1362 = vpop.permute.xlu0 %1361
      %v1364 = vunpack.c.l.s4 269488144
      %v1365 = vunpack.c.0.s8 %v1364
      %v1366 = vlaneseq
      %v1367 = vshrl.u32 %v1366, 7
      %v1368 = vsub.s32 %v1365, %v1367
      %v1369 = vrot.slane %v1362, %v1368
      %v1371 = vmul.f32 %v1340, %v1369
      %1373 = vrot.lane.b32.xlu0 %v1371, 64
      %v1374 = vpop.permute.xlu0 %1373
      %v1375 = vrot.slane %v1374, 6
      %v1376 = vsel %vm715, %v1375, %v1374
      %v1378 = vadd.f32 %v1359, %v1376
      %1379 = vset.pattern.permute.xlu0 39
      %1380 = vperm.xlu0 %1379, %v623
      %v1381 = vpop.permute.xlu0 %1380
      %v1383 = vunpack.c.l.s4 269488144
      %v1384 = vunpack.c.0.s8 %v1383
      %v1385 = vlaneseq
      %v1386 = vshrl.u32 %v1385, 7
      %v1387 = vsub.s32 %v1384, %v1386
      %v1388 = vrot.slane %v1381, %v1387
      %v1390 = vmul.f32 %v1340, %v1388
      %1392 = vrot.lane.b32.xlu0 %v1390, 48
      %v1393 = vpop.permute.xlu0 %1392
      %v1394 = vrot.slane %v1393, 6
      %v1395 = vsel %vm735, %v1394, %v1393
      %v1397 = vadd.f32 %v1378, %v1395
      %1398 = vset.pattern.permute.xlu0 46
      %1399 = vperm.xlu0 %1398, %v623
      %v1400 = vpop.permute.xlu0 %1399
      %v1402 = vunpack.c.l.s4 269488144
      %v1403 = vunpack.c.0.s8 %v1402
      %v1404 = vlaneseq
      %v1405 = vshrl.u32 %v1404, 7
      %v1406 = vsub.s32 %v1403, %v1405
      %v1407 = vrot.slane %v1400, %v1406
      %v1409 = vmul.f32 %v1340, %v1407
      %1411 = vrot.lane.b32.xlu0 %v1409, 32
      %v1412 = vpop.permute.xlu0 %1411
      %v1413 = vrot.slane %v1412, 6
      %v1414 = vsel %vm755, %v1413, %v1412
      %v1416 = vadd.f32 %v1397, %v1414
      %v1418 = vcombine.high %v1416, %v1416
      %v1420 = vunpack.c.l.s4 1983009808
      %v1421 = vunpack.c.0.s8 %v1420
      %v1422 = vlaneseq
      %v1423 = vshrl.u32 %v1422, 7
      %v1424 = vsub.s32 %v1421, %v1423
      %v1425 = vrot.slane %v1416, %v1424
      %v1427 = vunpack.c.l.s4 1983009808
      %v1428 = vunpack.c.0.s8 %v1427
      %v1429 = vlaneseq
      %v1430 = vshrl.u32 %v1429, 7
      %v1431 = vsub.s32 %v1428, %v1430
      %v1432 = vrot.slane %v1418, %v1431
      %v1433 = vcombine.high %v1425, %v1425
      %1434 = vrot.lane.b32.xlu0 %v1425, 47
      %v1435 = vpop.permute.xlu0 %1434
      %1436 = vrot.lane.b32.xlu0 %v1433, 47
      %v1437 = vpop.permute.xlu0 %1436
      %1438 = vrot.lane.b32.xlu0 %v1432, 47
      %v1439 = vpop.permute.xlu0 %1438
      %vm1440 = vcmask 384000
      %v1441 = vsel %vm1440, %v1435, %v1437
      %v1442 = vsel %vm1440, %v1437, %v1439
      %v1445 = vsel %vm365, %v1441, 0.0
      %v1446 = vsel %vm366, %v1442, 0.0
      %v1447 = vadd.f32 %v1286, %v1445
      %v1448 = vadd.f32 %v1287, %v1446
      %v1449 = vld [vmem:[#allocation3] sm:$0x3f]
      %1450 = vset.pattern.permute.xlu0 5
      %1451 = vperm.xlu0 %1450, %v623
      %v1452 = vpop.permute.xlu0 %1451
      %v1454 = vunpack.c.l.s4 269488144
      %v1455 = vunpack.c.0.s8 %v1454
      %v1456 = vlaneseq
      %v1457 = vshrl.u32 %v1456, 7
      %v1458 = vsub.s32 %v1455, %v1457
      %v1459 = vrot.slane %v1452, %v1458
      %v1461 = vmul.f32 %v1449, %v1459
      %v1462 = vadd.f32 %v1461, 0.0
      %1463 = vset.pattern.permute.xlu0 12
      %1464 = vperm.xlu0 %1463, %v623
      %v1465 = vpop.permute.xlu0 %1464
      %v1467 = vunpack.c.l.s4 269488144
      %v1468 = vunpack.c.0.s8 %v1467
      %v1469 = vlaneseq
      %v1470 = vshrl.u32 %v1469, 7
      %v1471 = vsub.s32 %v1468, %v1470
      %v1472 = vrot.slane %v1465, %v1471
      %v1474 = vmul.f32 %v1449, %v1472
      %1476 = vrot.lane.b32.xlu0 %v1474, 112
      %v1477 = vpop.permute.xlu0 %1476
      %v1478 = vrot.slane %v1477, 2
      %v1479 = vsel %vm451, %v1477, %v1478
      %v1481 = vadd.f32 %v1462, %v1479
      %1482 = vset.pattern.permute.xlu0 19
      %1483 = vperm.xlu0 %1482, %v623
      %v1484 = vpop.permute.xlu0 %1483
      %v1486 = vunpack.c.l.s4 269488144
      %v1487 = vunpack.c.0.s8 %v1486
      %v1488 = vlaneseq
      %v1489 = vshrl.u32 %v1488, 7
      %v1490 = vsub.s32 %v1487, %v1489
      %v1491 = vrot.slane %v1484, %v1490
      %v1493 = vmul.f32 %v1449, %v1491
      %1495 = vrot.lane.b32.xlu0 %v1493, 96
      %v1496 = vpop.permute.xlu0 %1495
      %v1497 = vrot.slane %v1496, 2
      %v1498 = vsel %vm674, %v1496, %v1497
      %v1500 = vadd.f32 %v1481, %v1498
      %v1501 = vld [vmem:[#allocation3 + $0x2] sm:$0x3f]
      %1502 = vset.pattern.permute.xlu0 26
      %1503 = vperm.xlu0 %1502, %v623
      %v1504 = vpop.permute.xlu0 %1503
      %v1506 = vunpack.c.l.s4 269488144
      %v1507 = vunpack.c.0.s8 %v1506
      %v1508 = vlaneseq
      %v1509 = vshrl.u32 %v1508, 7
      %v1510 = vsub.s32 %v1507, %v1509
      %v1511 = vrot.slane %v1504, %v1510
      %v1513 = vmul.f32 %v1501, %v1511
      %1515 = vrot.lane.b32.xlu0 %v1513, 80
      %v1516 = vpop.permute.xlu0 %1515
      %v1517 = vrot.slane %v1516, 6
      %v1518 = vsel %vm694, %v1517, %v1516
      %v1520 = vadd.f32 %v1500, %v1518
      %1521 = vset.pattern.permute.xlu0 33
      %1522 = vperm.xlu0 %1521, %v623
      %v1523 = vpop.permute.xlu0 %1522
      %v1525 = vunpack.c.l.s4 269488144
      %v1526 = vunpack.c.0.s8 %v1525
      %v1527 = vlaneseq
      %v1528 = vshrl.u32 %v1527, 7
      %v1529 = vsub.s32 %v1526, %v1528
      %v1530 = vrot.slane %v1523, %v1529
      %v1532 = vmul.f32 %v1501, %v1530
      %1534 = vrot.lane.b32.xlu0 %v1532, 64
      %v1535 = vpop.permute.xlu0 %1534
      %v1536 = vrot.slane %v1535, 6
      %v1537 = vsel %vm715, %v1536, %v1535
      %v1539 = vadd.f32 %v1520, %v1537
      %1540 = vset.pattern.permute.xlu0 40
      %1541 = vperm.xlu0 %1540, %v623
      %v1542 = vpop.permute.xlu0 %1541
      %v1544 = vunpack.c.l.s4 269488144
      %v1545 = vunpack.c.0.s8 %v1544
      %v1546 = vlaneseq
      %v1547 = vshrl.u32 %v1546, 7
      %v1548 = vsub.s32 %v1545, %v1547
      %v1549 = vrot.slane %v1542, %v1548
      %v1551 = vmul.f32 %v1501, %v1549
      %1553 = vrot.lane.b32.xlu0 %v1551, 48
      %v1554 = vpop.permute.xlu0 %1553
      %v1555 = vrot.slane %v1554, 6
      %v1556 = vsel %vm735, %v1555, %v1554
      %v1558 = vadd.f32 %v1539, %v1556
      %1559 = vset.pattern.permute.xlu0 47
      %1560 = vperm.xlu0 %1559, %v623
      %v1561 = vpop.permute.xlu0 %1560
      %v1563 = vunpack.c.l.s4 269488144
      %v1564 = vunpack.c.0.s8 %v1563
      %v1565 = vlaneseq
      %v1566 = vshrl.u32 %v1565, 7
      %v1567 = vsub.s32 %v1564, %v1566
      %v1568 = vrot.slane %v1561, %v1567
      %v1570 = vmul.f32 %v1501, %v1568
      %1572 = vrot.lane.b32.xlu0 %v1570, 32
      %v1573 = vpop.permute.xlu0 %1572
      %v1574 = vrot.slane %v1573, 6
      %v1575 = vsel %vm755, %v1574, %v1573
      %v1577 = vadd.f32 %v1558, %v1575
      %vm1578 = vcmp.lt.s32.totalorder %v327, 14
      %vm1579 = vcmp.lt.s32.totalorder %v328, 14
      %vm1580 = vmand %vm357, %vm1578
      %vm1581 = vmand %vm358, %vm1579
      %v1582 = vsel %vm1580, 1, 0
      %v1583 = vsel %vm1581, 1, 0
      %vm1584 = vcmp.eq.s32.totalorder %v1582, 1
      %vm1585 = vcmp.eq.s32.totalorder %v1583, 1
      %v1587 = vcombine.high %v1577, %v1577
      %v1589 = vunpack.c.l.s4 1983009808
      %v1590 = vunpack.c.0.s8 %v1589
      %v1591 = vlaneseq
      %v1592 = vshrl.u32 %v1591, 7
      %v1593 = vsub.s32 %v1590, %v1592
      %v1594 = vrot.slane %v1577, %v1593
      %v1596 = vunpack.c.l.s4 1983009808
      %v1597 = vunpack.c.0.s8 %v1596
      %v1598 = vlaneseq
      %v1599 = vshrl.u32 %v1598, 7
      %v1600 = vsub.s32 %v1597, %v1599
      %v1601 = vrot.slane %v1587, %v1600
      %v1602 = vcombine.high %v1594, %v1594
      %1603 = vrot.lane.b32.xlu0 %v1594, 46
      %v1604 = vpop.permute.xlu0 %1603
      %1605 = vrot.lane.b32.xlu0 %v1602, 46
      %v1606 = vpop.permute.xlu0 %1605
      %1607 = vrot.lane.b32.xlu0 %v1601, 46
      %v1608 = vpop.permute.xlu0 %1607
      %vm1609 = vcmask 375808
      %v1610 = vsel %vm1609, %v1604, %v1606
      %v1611 = vsel %vm1609, %v1606, %v1608
      %v1614 = vsel %vm1584, %v1610, 0.0
      %v1615 = vsel %vm1585, %v1611, 0.0
      %v1616 = vadd.f32 %v1447, %v1614
      %v1617 = vadd.f32 %v1448, %v1615
      %v1618 = vld [vmem:[#allocation3] sm:$0x3f]
      %1619 = vset.pattern.permute.xlu0 6
      %1620 = vperm.xlu0 %1619, %v623
      %v1621 = vpop.permute.xlu0 %1620
      %v1623 = vunpack.c.l.s4 269488144
      %v1624 = vunpack.c.0.s8 %v1623
      %v1625 = vlaneseq
      %v1626 = vshrl.u32 %v1625, 7
      %v1627 = vsub.s32 %v1624, %v1626
      %v1628 = vrot.slane %v1621, %v1627
      %v1630 = vmul.f32 %v1618, %v1628
      %v1631 = vadd.f32 %v1630, 0.0
      %1632 = vset.pattern.permute.xlu0 13
      %1633 = vperm.xlu0 %1632, %v623
      %v1634 = vpop.permute.xlu0 %1633
      %v1636 = vunpack.c.l.s4 269488144
      %v1637 = vunpack.c.0.s8 %v1636
      %v1638 = vlaneseq
      %v1639 = vshrl.u32 %v1638, 7
      %v1640 = vsub.s32 %v1637, %v1639
      %v1641 = vrot.slane %v1634, %v1640
      %v1643 = vmul.f32 %v1618, %v1641
      %1645 = vrot.lane.b32.xlu0 %v1643, 112
      %v1646 = vpop.permute.xlu0 %1645
      %v1647 = vrot.slane %v1646, 2
      %v1648 = vsel %vm451, %v1646, %v1647
      %v1650 = vadd.f32 %v1631, %v1648
      %1651 = vset.pattern.permute.xlu0 20
      %1652 = vperm.xlu0 %1651, %v623
      %v1653 = vpop.permute.xlu0 %1652
      %v1655 = vunpack.c.l.s4 269488144
      %v1656 = vunpack.c.0.s8 %v1655
      %v1657 = vlaneseq
      %v1658 = vshrl.u32 %v1657, 7
      %v1659 = vsub.s32 %v1656, %v1658
      %v1660 = vrot.slane %v1653, %v1659
      %v1662 = vmul.f32 %v1618, %v1660
      %1664 = vrot.lane.b32.xlu0 %v1662, 96
      %v1665 = vpop.permute.xlu0 %1664
      %v1666 = vrot.slane %v1665, 2
      %v1667 = vsel %vm674, %v1665, %v1666
      %v1669 = vadd.f32 %v1650, %v1667
      %v1670 = vld [vmem:[#allocation3 + $0x2] sm:$0x3f]
      %1671 = vset.pattern.permute.xlu0 27
      %1672 = vperm.xlu0 %1671, %v623
      %v1673 = vpop.permute.xlu0 %1672
      %v1675 = vunpack.c.l.s4 269488144
      %v1676 = vunpack.c.0.s8 %v1675
      %v1677 = vlaneseq
      %v1678 = vshrl.u32 %v1677, 7
      %v1679 = vsub.s32 %v1676, %v1678
      %v1680 = vrot.slane %v1673, %v1679
      %v1682 = vmul.f32 %v1670, %v1680
      %1684 = vrot.lane.b32.xlu0 %v1682, 80
      %v1685 = vpop.permute.xlu0 %1684
      %v1686 = vrot.slane %v1685, 6
      %v1687 = vsel %vm694, %v1686, %v1685
      %v1689 = vadd.f32 %v1669, %v1687
      %1690 = vset.pattern.permute.xlu0 34
      %1691 = vperm.xlu0 %1690, %v623
      %v1692 = vpop.permute.xlu0 %1691
      %v1694 = vunpack.c.l.s4 269488144
      %v1695 = vunpack.c.0.s8 %v1694
      %v1696 = vlaneseq
      %v1697 = vshrl.u32 %v1696, 7
      %v1698 = vsub.s32 %v1695, %v1697
      %v1699 = vrot.slane %v1692, %v1698
      %v1701 = vmul.f32 %v1670, %v1699
      %1703 = vrot.lane.b32.xlu0 %v1701, 64
      %v1704 = vpop.permute.xlu0 %1703
      %v1705 = vrot.slane %v1704, 6
      %v1706 = vsel %vm715, %v1705, %v1704
      %v1708 = vadd.f32 %v1689, %v1706
      %1709 = vset.pattern.permute.xlu0 41
      %1710 = vperm.xlu0 %1709, %v623
      %v1711 = vpop.permute.xlu0 %1710
      %v1713 = vunpack.c.l.s4 269488144
      %v1714 = vunpack.c.0.s8 %v1713
      %v1715 = vlaneseq
      %v1716 = vshrl.u32 %v1715, 7
      %v1717 = vsub.s32 %v1714, %v1716
      %v1718 = vrot.slane %v1711, %v1717
      %v1720 = vmul.f32 %v1670, %v1718
      %1722 = vrot.lane.b32.xlu0 %v1720, 48
      %v1723 = vpop.permute.xlu0 %1722
      %v1724 = vrot.slane %v1723, 6
      %v1725 = vsel %vm735, %v1724, %v1723
      %v1727 = vadd.f32 %v1708, %v1725
      %1728 = vset.pattern.permute.xlu0 48
      %1729 = vperm.xlu0 %1728, %v623
      %v1730 = vpop.permute.xlu0 %1729
      %v1732 = vunpack.c.l.s4 269488144
      %v1733 = vunpack.c.0.s8 %v1732
      %v1734 = vlaneseq
      %v1735 = vshrl.u32 %v1734, 7
      %v1736 = vsub.s32 %v1733, %v1735
      %v1737 = vrot.slane %v1730, %v1736
      %v1739 = vmul.f32 %v1670, %v1737
      %1741 = vrot.lane.b32.xlu0 %v1739, 32
      %v1742 = vpop.permute.xlu0 %1741
      %v1743 = vrot.slane %v1742, 6
      %v1744 = vsel %vm755, %v1743, %v1742
      %v1746 = vadd.f32 %v1727, %v1744
      %vm1747 = vcmp.lt.s32.totalorder %v327, 13
      %vm1748 = vcmp.lt.s32.totalorder %v328, 13
      %vm1749 = vmand %vm357, %vm1747
      %vm1750 = vmand %vm358, %vm1748
      %v1751 = vsel %vm1749, 1, 0
      %v1752 = vsel %vm1750, 1, 0
      %vm1753 = vcmp.eq.s32.totalorder %v1751, 1
      %vm1754 = vcmp.eq.s32.totalorder %v1752, 1
      %v1756 = vcombine.high %v1746, %v1746
      %v1758 = vunpack.c.l.s4 1983009808
      %v1759 = vunpack.c.0.s8 %v1758
      %v1760 = vlaneseq
      %v1761 = vshrl.u32 %v1760, 7
      %v1762 = vsub.s32 %v1759, %v1761
      %v1763 = vrot.slane %v1746, %v1762
      %v1765 = vunpack.c.l.s4 1983009808
      %v1766 = vunpack.c.0.s8 %v1765
      %v1767 = vlaneseq
      %v1768 = vshrl.u32 %v1767, 7
      %v1769 = vsub.s32 %v1766, %v1768
      %v1770 = vrot.slane %v1756, %v1769
      %v1771 = vcombine.high %v1763, %v1763
      %1772 = vrot.lane.b32.xlu0 %v1763, 45
      %v1773 = vpop.permute.xlu0 %1772
      %1774 = vrot.lane.b32.xlu0 %v1771, 45
      %v1775 = vpop.permute.xlu0 %1774
      %1776 = vrot.lane.b32.xlu0 %v1770, 45
      %v1777 = vpop.permute.xlu0 %1776
      %vm1778 = vcmask 367616
      %v1779 = vsel %vm1778, %v1773, %v1775
      %v1780 = vsel %vm1778, %v1775, %v1777
      %v1783 = vsel %vm1753, %v1779, 0.0
      %v1784 = vsel %vm1754, %v1780, 0.0
      %v1785 = vadd.f32 %v1616, %v1783
      %v1786 = vadd.f32 %v1617, %v1784
      %v1789 = vrot.slane %v1785, 1
      %v1790 = vrot.slane %v1786, 1
      %v1793 = vadd.f32 %v1785, %v1789
      %v1794 = vadd.f32 %v1786, %v1790
      %s1795 = sld [smem:[#allocation4]]
      %v1796 = vstv %s1795
      %v1797 = vadd.f32 %v1793, %v1796
      %v1798 = vadd.f32 %v1794, %v1796
      %v1799 = vxor.u32 %v1797, 2147483648
      %v1800 = vxor.u32 %v1798, 2147483648
      %v1801 = vmul.f32 %v1799, 1.442695
      %v1802 = vpow.pop %v1801
      %v1803 = vmul.f32 %v1800, 1.442695
      %v1804 = vpow.pop %v1803
      %v1805 = vadd.f32 %v1802, 1.0
      %v1806 = vadd.f32 %v1804, 1.0
      %v1807 = vrcp.pop %v1805
      %v1808 = vmul.f32 1.0, %v1807
      %v1809 = vrcp.pop %v1806
      %v1810 = vmul.f32 1.0, %v1809
      %v1813 = vcombine.low %v1808, %v1810
      %v1815 = vunpack.c.l.s4 1966171168
      %v1816 = vunpack.c.0.s8 %v1815
      %v1817 = vlaneseq
      %v1818 = vshrl.u32 %v1817, 7
      %v1819 = vsub.s32 %v1816, %v1818
      %v1820 = vrot.slane %v1813, %v1819
      %v1822 = vunpack.c.l.s4 1966171168
      %v1823 = vunpack.c.0.s8 %v1822
      %v1824 = vlaneseq
      %v1825 = vshrl.u32 %v1824, 7
      %v1826 = vsub.s32 %v1823, %v1825
      %v1827 = vrot.slane %v1820, %v1826
      %1829 = vst.msk [vmem:[%s290] sm:$0x3] %vm600, %v1827
      %p1830 = scmp.lt.s32.totalorder %s20, 1
      %s1831 = scalar_select %p1830, %s20, 1
      %s1832 = smul.addr %s1831, 2
      %s1833 = smul.addr %s1832, 8
      %s1834 = scalar_lea.vmem %s6, %s1833
      %p1835 = scmp.lt.s32.totalorder %s20, 1
      %s1836 = scalar_select %p1835, %s20, 1
      %s1837 = smul.addr %s1836, 2
      %s1838 = scalar_lea.vmem %s7, %s1837
      // Predicated region
      $region45: #{spatial_attention.1} parent=43 // pred_check
        %p1839 = pneg %p169
      $region46: #{spatial_attention.1} parent=43 // pred_check_branch
        %1841 = sbr.rel (%p1839) target = $region48
      $region47: #{spatial_attention.1} parent=43 // pred_region
        _
      $region48: #{spatial_attention.1} parent=43 // pred_fallthru
        _
      // Predicated region
      $region49: #{spatial_attention.1} parent=43 // pred_check
        %p1842 = pneg %p195
      $region50: #{spatial_attention.1} parent=43 // pred_check_branch
        %1844 = sbr.rel (%p1842) target = $region52
      $region51: #{spatial_attention.1} parent=43 // pred_region
        _
      $region52: #{spatial_attention.1} parent=43 // pred_fallthru
        _
    $region44: #{spatial_attention.1} parent=5 // pred_fallthru
      _
    %p1845 = scmp.le.s32.totalorder 2, %s15
    // Predicated region
    $region53: #{spatial_attention.1} parent=5 // pred_check
      %p1846 = pneg %p1845
    $region54: #{spatial_attention.1} parent=5 // pred_check_branch
      %1848 = sbr.rel (%p1846) target = $region56
    $region55: #{spatial_attention.1} parent=5 // pred_region
      %s1849 = ssub.s32 %s15, 2
      // Predicated region
      $region57: #{spatial_attention.1} parent=55 // pred_check
        %p1850 = pneg %p175
      $region58: #{spatial_attention.1} parent=55 // pred_check_branch
        %1852 = sbr.rel (%p1850) target = $region60
      $region59: #{spatial_attention.1} parent=55 // pred_region
        %p1853 = scmp.lt.s32.totalorder %s21, 1
        %s1854 = scalar_select %p1853, %s21, 1
        %s1855 = smul.addr %s1854, 2
        %s1856 = smul.addr %s1855, 8
        %s1857 = scalar_lea.vmem %s6, %s1856
      $region60: #{spatial_attention.1} parent=55 // pred_fallthru
        _
      // Predicated region
      $region61: #{spatial_attention.1} parent=55 // pred_check
        %p1858 = pneg %p201
      $region62: #{spatial_attention.1} parent=55 // pred_check_branch
        %1860 = sbr.rel (%p1858) target = $region64
      $region63: #{spatial_attention.1} parent=55 // pred_region
        %p1861 = scmp.lt.s32.totalorder %s21, 1
        %s1862 = scalar_select %p1861, %s21, 1
        %s1863 = smul.addr %s1862, 2
        %s1864 = scalar_lea.vmem %s7, %s1863
      $region64: #{spatial_attention.1} parent=55 // pred_fallthru
        _
    $region56: #{spatial_attention.1} parent=5 // pred_fallthru
      _
  $region6: #{spatial_attention.1} parent=0 // loop_footer
    %s19 = sadd.s32 1, %s15
  $region7: #{spatial_attention.1} parent=0 // loop_footer_branch
    %14 = sbr.rel target = $region3
  $region8: #{spatial_attention.1} parent=0 // loop_exit
    _

</llo_original>
